<compile_context>
chip_gen: v5e
topology: v5e:2x2
jax: 0.10.0
libtpu: 0.0.40
codegen_flags: <defaults>
</compile_context>

<pallas_src>
import jax
import jax.numpy as jnp
from jax import lax
from jax.experimental import pallas as pl
from jax.experimental.pallas import tpu as pltpu


def generate_planes():
    return jnp.array(
        [[[1, 0, 0], [0, 1, 0], [0, 0, 1]],
         [[1, 0, 0], [0, 0, 1], [0, 1, 0]],
         [[0, 0, 1], [1, 0, 0], [0, 1, 0]]],
        dtype=jnp.float32,
    )


def project_onto_planes(planes, coordinates):
    """Spec-shaped helper: coordinates (N, M, 3) -> (N*n_planes, M, 2)."""
    N, M, _ = coordinates.shape
    n_planes = planes.shape[0]
    coords = jnp.broadcast_to(coordinates[:, None], (N, n_planes, M, 3))
    coords = coords.reshape(N * n_planes, M, 3)
    inv_planes = jnp.linalg.inv(planes)                      # (n_planes, 3, 3)
    inv_planes = jnp.broadcast_to(inv_planes[None], (N, n_planes, 3, 3))
    inv_planes = inv_planes.reshape(N * n_planes, 3, 3)
    proj = jnp.einsum('bmi,bij->bmj', coords, inv_planes)    # bmm
    return proj[..., :2]


def _project_onto_planes_lane_dense(inv_planes, coordinates):
    """coordinates (N, M, 3), inv_planes (n_planes, 3, 3) -> (N*n_planes, 2, M).

    Produces the projections directly in lane-dense (points-on-lanes) layout;
    no (B, M, 2) intermediate and no transpose in the glue path.
    """
    N, M, _ = coordinates.shape
    n_planes = inv_planes.shape[0]
    proj = jnp.einsum('bmi,pij->bpjm', coordinates, inv_planes)
    return proj[:, :, :2, :].reshape(N * n_planes, 2, M)


def _make_grid_sample_kernel(H, W, C, c_chunk):
    Hf = float(H)
    Wf = float(W)
    n_chunks = C // c_chunk

    def kernel(coords_ref, feat_ref, out_ref):
        coords = coords_ref[0]                       # (2, Mt) f32, points on lanes
        mt = coords.shape[1]
        gx = coords[0:1, :]                          # (1, Mt) -> width axis (x)
        gy = coords[1:2, :]                          # (1, Mt) -> height axis (y)

        # align_corners=False unnormalization
        ix = ((gx + 1.0) * Wf - 1.0) * 0.5
        iy = ((gy + 1.0) * Hf - 1.0) * 0.5

        x0f = jnp.floor(ix)
        y0f = jnp.floor(iy)
        wx1 = ix - x0f
        wx0 = 1.0 - wx1
        wy1 = iy - y0f
        wy0 = 1.0 - wy1

        x0 = x0f.astype(jnp.int32)
        x1 = x0 + 1
        y0 = y0f.astype(jnp.int32)
        y1 = y0 + 1

        # Separable one-hot weight matrices, points on lanes.
        # padding_mode='zeros': an out-of-range index never matches the iota,
        # so its one-hot column is all zeros -- no explicit validity mask.
        w_iota = lax.broadcasted_iota(jnp.int32, (W, mt), 0)
        h_iota = lax.broadcasted_iota(jnp.int32, (H, mt), 0)
        wx_t = (jnp.where(w_iota == x0, wx0, 0.0)
                + jnp.where(w_iota == x1, wx1, 0.0))         # (W, Mt) f32
        wy_t = (jnp.where(h_iota == y0, wy0, 0.0)
                + jnp.where(h_iota == y1, wy1, 0.0))         # (H, Mt) f32
        wy_b = wy_t.reshape(1, H, mt)                        # hoisted out of loop

        # bf16x2 split of the column one-hot (reused by every channel chunk).
        wx_hi = wx_t.astype(jnp.bfloat16)
        wx_lo = (wx_t - wx_hi.astype(jnp.float32)).astype(jnp.bfloat16)

        # Channel-chunked column matmul (MXU) + row interpolation (VPU/XLU).
        # Keeps live temporaries at O(Cc*H*Mt) and lets the next chunk's MXU
        # work overlap the previous chunk's reduce.
        for ci in range(n_chunks):
            r0 = ci * c_chunk * H
            fc = feat_ref[0, r0:r0 + c_chunk * H, :]         # (Cc*H, W) f32
            f_hi = fc.astype(jnp.bfloat16)
            f_lo = (fc - f_hi.astype(jnp.float32)).astype(jnp.bfloat16)
            # bf16 operands, f32 accumulation; lo*lo term dropped (negligible).
            col = (jnp.dot(f_hi, wx_hi, preferred_element_type=jnp.float32)
                   + jnp.dot(f_hi, wx_lo, preferred_element_type=jnp.float32)
                   + jnp.dot(f_lo, wx_hi, preferred_element_type=jnp.float32))
            # Row (height) interpolation: multiply by (H, Mt) row weights and
            # reduce over H (sublane reduction); output stays lane-dense.
            col = col.reshape(c_chunk, H, mt)
            out = jnp.sum(col * wy_b, axis=1)                # (Cc, Mt) f32
            out_ref[0, ci * c_chunk:(ci + 1) * c_chunk, :] = out.astype(out_ref.dtype)

    return kernel


def grid_sample_pallas(features_nchw, grids_2m):
    """features_nchw: (B, C, H, W); grids_2m: (B, 2, M) -> (B, C, M)."""
    B, C, H, W = features_nchw.shape
    _, _, M = grids_2m.shape
    grids_2m = grids_2m.astype(jnp.float32)

    # Point tile: multiple of 128 lanes, up to 512 to amortize per-step
    # overhead and fill the 256-wide MXU N dimension.
    m_pad128 = int(pl.cdiv(M, 128)) * 128
    m_tile = min(512, m_pad128)
    m_pad = int(pl.cdiv(M, m_tile)) * m_tile
    if m_pad != M:
        grids_2m = jnp.pad(grids_2m, ((0, 0), (0, 0), (0, m_pad - M)))

    feats = features_nchw.reshape(B, C * H, W)   # natural NCHW flattening, no transpose

    # Channel chunk for the in-kernel loop.
    if C <= 8:
        c_chunk = C
    else:
        c_chunk = next(d for d in (8, 4, 2, 1) if C % d == 0)

    # Feature block is invariant across M tiles: single-buffer it once it gets
    # big (halves feature VMEM; one exposed DMA per batch element is cheap).
    feat_block_bytes = C * H * W * feats.dtype.itemsize
    feat_spec_kwargs = {}
    n_feat_bufs = 2
    if feat_block_bytes > (4 << 20):
        feat_spec_kwargs["pipeline_mode"] = pl.Buffered(1)
        n_feat_bufs = 1
    feat_spec = pl.BlockSpec((1, C * H, W), lambda b, mi: (b, 0, 0),
                             **feat_spec_kwargs)

    # Explicit VMEM budget (blocks + in-kernel temps, with headroom).
    vmem_bytes = (n_feat_bufs * feat_block_bytes
                  + 2 * (2 * m_tile * 4)            # coord tiles (double-buffered)
                  + 2 * (C * m_tile * 4)            # output tiles (double-buffered)
                  + (3 * W + 2 * H) * m_tile * 4    # one-hot weights (+bf16 copies)
                  + 6 * c_chunk * H * m_tile * 4)   # matmul / row-interp temps
    vmem_limit = int(min(max(vmem_bytes * 1.5 + (2 << 20), 32 << 20), 64 << 20))

    out = pl.pallas_call(
        _make_grid_sample_kernel(H, W, C, c_chunk),
        out_shape=jax.ShapeDtypeStruct((B, C, m_pad), features_nchw.dtype),
        grid=(B, m_pad // m_tile),
        in_specs=[
            pl.BlockSpec((1, 2, m_tile), lambda b, mi: (b, 0, mi)),
            feat_spec,
        ],
        out_specs=pl.BlockSpec((1, C, m_tile), lambda b, mi: (b, 0, mi)),
        compiler_params=pltpu.CompilerParams(
            # B (=N*n_planes) is the parallel/megacore axis; the M-tile axis is
            # sequential so the plane features stay resident on one core and
            # are not re-DMA'd per point tile.
            dimension_semantics=("parallel", "arbitrary"),
            vmem_limit_bytes=vmem_limit),
    )(grids_2m, feats)
    return out[:, :, :M]


def sample_from_planes(inv_plane_axes, plane_features, coordinates, box_warp):
    N, n_planes, C, H, W = plane_features.shape
    _, M, _ = coordinates.shape
    feats = plane_features.reshape(N * n_planes, C, H, W)     # stays NCHW
    coords = (2.0 / box_warp) * coordinates
    proj_t = _project_onto_planes_lane_dense(inv_plane_axes, coords)  # (B, 2, M)
    out = grid_sample_pallas(feats, proj_t)                   # (B, C, M)
    out = out.reshape(N, n_planes, C, M)
    # Spec requires (N, n_planes, M, C).  If the downstream consumer can take
    # (N, n_planes, C, M) this transpose (a full HBM round-trip) can be dropped.
    return jnp.transpose(out, (0, 1, 3, 2))


def _triplane_sample(inv_plane_axes, images5, points, box_warp=1.6):
    N = images5.shape[0]
    pts = jnp.broadcast_to(points[None], (N,) + points.shape)
    return sample_from_planes(inv_plane_axes, images5, pts, box_warp)


class TriPlane:
    def __init__(self, focal, poses, images, count):
        self.plane_axes = generate_planes()
        # 3x3 plane-axis inverse is a fixed constant; compute it once here.
        self.inv_plane_axes = jnp.linalg.inv(self.plane_axes)
        self.focal = focal
        self.poses = poses
        self.count = count
        self.images = images.reshape(
            images.shape[0], 3, 32, images.shape[-2], images.shape[-1])
        self._sample_jit = jax.jit(_triplane_sample)

    def forward(self, points=None):
        return self._sample_jit(self.inv_plane_axes, self.images, points)


# ------------------------- pure-JAX reference (check) ------------------------

def _grid_sample_ref(feat_nchw, grid_xy):
    """Bilinear grid_sample, align_corners=False, zeros padding.
    feat_nchw: (B, C, H, W); grid_xy: (B, M, 2) -> (B, C, M)."""
    B, C, H, W = feat_nchw.shape
    gx = grid_xy[..., 0]
    gy = grid_xy[..., 1]
    ix = ((gx + 1.0) * W - 1.0) * 0.5
    iy = ((gy + 1.0) * H - 1.0) * 0.5
    x0f = jnp.floor(ix)
    y0f = jnp.floor(iy)
    wx1 = ix - x0f
    wx0 = 1.0 - wx1
    wy1 = iy - y0f
    wy0 = 1.0 - wy1
    x0 = x0f.astype(jnp.int32)
    x1 = x0 + 1
    y0 = y0f.astype(jnp.int32)
    y1 = y0 + 1
    flat = feat_nchw.reshape(B, C, H * W)

    def corner(yi, xi, w):
        valid = (xi >= 0) & (xi < W) & (yi >= 0) & (yi < H)
        yc = jnp.clip(yi, 0, H - 1)
        xc = jnp.clip(xi, 0, W - 1)
        idx = (yc * W + xc)[:, None, :]                       # (B, 1, M)
        g = jnp.take_along_axis(flat, idx, axis=2)            # (B, C, M)
        return jnp.where(valid[:, None, :], g, 0.0) * w[:, None, :]

    return (corner(y0, x0, wy0 * wx0) + corner(y0, x1, wy0 * wx1)
            + corner(y1, x0, wy1 * wx0) + corner(y1, x1, wy1 * wx1))


def _forward_ref(images5, points, box_warp):
    plane_axes = generate_planes()
    N, n_planes, C, H, W = images5.shape
    pts = jnp.broadcast_to(points[None], (N,) + points.shape)
    coords = (2.0 / box_warp) * pts
    proj = project_onto_planes(plane_axes, coords)            # (B, M, 2)
    feats = images5.reshape(N * n_planes, C, H, W)
    out = _grid_sample_ref(feats, proj)                       # (B, C, M)
    return jnp.transpose(out.reshape(N, n_planes, C, M), (0, 1, 3, 2))


if __name__ == "__main__":
    key = jax.random.PRNGKey(0)
    k_img, k_pts = jax.random.split(key)

    N, H, W, M = 2, 16, 16, 8
    # images enter as (N, 3*32, H, W), as in the PyTorch module __init__
    images = jax.random.normal(k_img, (N, 3 * 32, H, W), dtype=jnp.float32)
    # +-1.0 points scaled by 2/1.6 produce some grid coords outside [-1, 1],
    # which exercises the padding_mode='zeros' path.
    points = jax.random.uniform(
        k_pts, (M, 3), minval=-1.0, maxval=1.0, dtype=jnp.float32)

    model = TriPlane(focal=1.0, poses=None, images=images, count=N)
    out = jax.block_until_ready(model.forward(points))

    assert out.shape == (N, 3, M, 32), out.shape
    assert bool(jnp.all(jnp.isfinite(out)))

    ref = jax.block_until_ready(_forward_ref(model.images, points, box_warp=1.6))
    max_err = float(jnp.max(jnp.abs(out - ref)))
    assert max_err < 1e-3, f"mismatch vs reference: {max_err}"

    print("KERNEL_OK")
</pallas_src>

<mosaic_0001>
module attributes {stable_mosaic.version = 11 : i64} {
  func.func @kernel(%arg0: i32, %arg1: i32, %arg2: memref<1x2x128xf32, #tpu.memory_space<vmem>>, %arg3: memref<1x512x16xf32, #tpu.memory_space<vmem>>, %arg4: memref<1x32x128xf32, #tpu.memory_space<vmem>>) attributes {dimension_semantics = [#tpu.dimension_semantics<parallel>, #tpu.dimension_semantics<arbitrary>], iteration_bounds = array<i64: 6, 1>, scalar_prefetch = 0 : i64, scratch_operands = 0 : i64, tpu.core_type = #tpu.core_type<tc>, window_params = [{transform_indices = @transform_0, window_bounds = array<i64: 1, 2, 128>}, {transform_indices = @transform_1, window_bounds = array<i64: 1, 512, 16>}, {transform_indices = @transform_2, window_bounds = array<i64: 1, 32, 128>}]} {
    %c0 = arith.constant 0 : index
    %c0_0 = arith.constant 0 : index
    %c0_1 = arith.constant 0 : index
    %0 = vector.load %arg2[%c0, %c0_0, %c0_1] : memref<1x2x128xf32, #tpu.memory_space<vmem>>, vector<1x2x128xf32>
    %1 = vector.shape_cast %0 : vector<1x2x128xf32> to vector<2x128xf32>
    %2 = vector.extract_strided_slice %1 {offsets = [0, 0], sizes = [1, 128], strides = [1, 1]} : vector<2x128xf32> to vector<1x128xf32>
    %3 = vector.extract_strided_slice %1 {offsets = [1, 0], sizes = [1, 128], strides = [1, 1]} : vector<2x128xf32> to vector<1x128xf32>
    %cst = arith.constant 1.000000e+00 : f32
    %4 = vector.broadcast %cst : f32 to vector<1x128xf32>
    %5 = arith.addf %2, %4 : vector<1x128xf32>
    %cst_2 = arith.constant 1.600000e+01 : f32
    %6 = vector.broadcast %cst_2 : f32 to vector<1x128xf32>
    %7 = arith.mulf %5, %6 : vector<1x128xf32>
    %cst_3 = arith.constant 1.000000e+00 : f32
    %8 = vector.broadcast %cst_3 : f32 to vector<1x128xf32>
    %9 = arith.subf %7, %8 : vector<1x128xf32>
    %cst_4 = arith.constant 5.000000e-01 : f32
    %10 = vector.broadcast %cst_4 : f32 to vector<1x128xf32>
    %11 = arith.mulf %9, %10 : vector<1x128xf32>
    %cst_5 = arith.constant 1.000000e+00 : f32
    %12 = vector.broadcast %cst_5 : f32 to vector<1x128xf32>
    %13 = arith.addf %3, %12 : vector<1x128xf32>
    %cst_6 = arith.constant 1.600000e+01 : f32
    %14 = vector.broadcast %cst_6 : f32 to vector<1x128xf32>
    %15 = arith.mulf %13, %14 : vector<1x128xf32>
    %cst_7 = arith.constant 1.000000e+00 : f32
    %16 = vector.broadcast %cst_7 : f32 to vector<1x128xf32>
    %17 = arith.subf %15, %16 : vector<1x128xf32>
    %cst_8 = arith.constant 5.000000e-01 : f32
    %18 = vector.broadcast %cst_8 : f32 to vector<1x128xf32>
    %19 = arith.mulf %17, %18 : vector<1x128xf32>
    %20 = math.floor %11 : vector<1x128xf32>
    %21 = math.floor %19 : vector<1x128xf32>
    %22 = arith.subf %11, %20 : vector<1x128xf32>
    %cst_9 = arith.constant 1.000000e+00 : f32
    %23 = vector.broadcast %cst_9 : f32 to vector<1x128xf32>
    %24 = arith.subf %23, %22 : vector<1x128xf32>
    %25 = arith.subf %19, %21 : vector<1x128xf32>
    %cst_10 = arith.constant 1.000000e+00 : f32
    %26 = vector.broadcast %cst_10 : f32 to vector<1x128xf32>
    %27 = arith.subf %26, %25 : vector<1x128xf32>
    %28 = arith.fptosi %20 : vector<1x128xf32> to vector<1x128xi32>
    %c1_i32 = arith.constant 1 : i32
    %29 = vector.broadcast %c1_i32 : i32 to vector<1x128xi32>
    %30 = arith.addi %28, %29 : vector<1x128xi32>
    %31 = arith.fptosi %21 : vector<1x128xf32> to vector<1x128xi32>
    %c1_i32_11 = arith.constant 1 : i32
    %32 = vector.broadcast %c1_i32_11 : i32 to vector<1x128xi32>
    %33 = arith.addi %31, %32 : vector<1x128xi32>
    %34 = tpu.iota {dimensions = array<i32: 0>} : vector<16x128xi32>
    %35 = tpu.iota {dimensions = array<i32: 0>} : vector<16x128xi32>
    %36 = vector.broadcast %28 : vector<1x128xi32> to vector<16x128xi32>
    %37 = arith.cmpi eq, %34, %36 : vector<16x128xi32>
    %cst_12 = arith.constant 0.000000e+00 : f32
    %38 = vector.shape_cast %24 : vector<1x128xf32> to vector<1x128xf32>
    %39 = vector.broadcast %38 : vector<1x128xf32> to vector<16x128xf32>
    %40 = vector.broadcast %cst_12 : f32 to vector<16x128xf32>
    %41 = arith.select %37, %39, %40 : vector<16x128xi1>, vector<16x128xf32>
    %42 = vector.broadcast %30 : vector<1x128xi32> to vector<16x128xi32>
    %43 = arith.cmpi eq, %34, %42 : vector<16x128xi32>
    %cst_13 = arith.constant 0.000000e+00 : f32
    %44 = vector.shape_cast %22 : vector<1x128xf32> to vector<1x128xf32>
    %45 = vector.broadcast %44 : vector<1x128xf32> to vector<16x128xf32>
    %46 = vector.broadcast %cst_13 : f32 to vector<16x128xf32>
    %47 = arith.select %43, %45, %46 : vector<16x128xi1>, vector<16x128xf32>
    %48 = arith.addf %41, %47 : vector<16x128xf32>
    %49 = vector.broadcast %31 : vector<1x128xi32> to vector<16x128xi32>
    %50 = arith.cmpi eq, %35, %49 : vector<16x128xi32>
    %cst_14 = arith.constant 0.000000e+00 : f32
    %51 = vector.shape_cast %27 : vector<1x128xf32> to vector<1x128xf32>
    %52 = vector.broadcast %51 : vector<1x128xf32> to vector<16x128xf32>
    %53 = vector.broadcast %cst_14 : f32 to vector<16x128xf32>
    %54 = arith.select %50, %52, %53 : vector<16x128xi1>, vector<16x128xf32>
    %55 = vector.broadcast %33 : vector<1x128xi32> to vector<16x128xi32>
    %56 = arith.cmpi eq, %35, %55 : vector<16x128xi32>
    %cst_15 = arith.constant 0.000000e+00 : f32
    %57 = vector.shape_cast %25 : vector<1x128xf32> to vector<1x128xf32>
    %58 = vector.broadcast %57 : vector<1x128xf32> to vector<16x128xf32>
    %59 = vector.broadcast %cst_15 : f32 to vector<16x128xf32>
    %60 = arith.select %56, %58, %59 : vector<16x128xi1>, vector<16x128xf32>
    %61 = arith.addf %54, %60 : vector<16x128xf32>
    %62 = vector.shape_cast %61 : vector<16x128xf32> to vector<1x16x128xf32>
    %63 = arith.truncf %48 : vector<16x128xf32> to vector<16x128xbf16>
    %64 = arith.extf %63 : vector<16x128xbf16> to vector<16x128xf32>
    %65 = arith.subf %48, %64 : vector<16x128xf32>
    %66 = arith.truncf %65 : vector<16x128xf32> to vector<16x128xbf16>
    %c0_16 = arith.constant 0 : index
    %c0_17 = arith.constant 0 : index
    %c0_18 = arith.constant 0 : index
    %67 = vector.load %arg3[%c0_16, %c0_17, %c0_18] : memref<1x512x16xf32, #tpu.memory_space<vmem>>, vector<1x128x16xf32>
    %68 = vector.shape_cast %67 : vector<1x128x16xf32> to vector<128x16xf32>
    %69 = arith.truncf %68 : vector<128x16xf32> to vector<128x16xbf16>
    %70 = arith.extf %69 : vector<128x16xbf16> to vector<128x16xf32>
    %71 = arith.subf %68, %70 : vector<128x16xf32>
    %72 = arith.truncf %71 : vector<128x16xf32> to vector<128x16xbf16>
    %cst_19 = arith.constant dense<0.000000e+00> : vector<128x128xf32>
    %73 = tpu.matmul %69, %63, %cst_19 {dimension_numbers = #tpu.dot_dimension_numbers<[1], [0], [0], [1], [0, 0, 1, 1], [], []>} : vector<128x16xbf16>, vector<16x128xbf16>, vector<128x128xf32> -> vector<128x128xf32>
    %cst_20 = arith.constant dense<0.000000e+00> : vector<128x128xf32>
    %74 = tpu.matmul %69, %66, %cst_20 {dimension_numbers = #tpu.dot_dimension_numbers<[1], [0], [0], [1], [0, 0, 1, 1], [], []>} : vector<128x16xbf16>, vector<16x128xbf16>, vector<128x128xf32> -> vector<128x128xf32>
    %75 = arith.addf %73, %74 : vector<128x128xf32>
    %cst_21 = arith.constant dense<0.000000e+00> : vector<128x128xf32>
    %76 = tpu.matmul %72, %63, %cst_21 {dimension_numbers = #tpu.dot_dimension_numbers<[1], [0], [0], [1], [0, 0, 1, 1], [], []>} : vector<128x16xbf16>, vector<16x128xbf16>, vector<128x128xf32> -> vector<128x128xf32>
    %77 = arith.addf %75, %76 : vector<128x128xf32>
    %78 = vector.shape_cast %77 : vector<128x128xf32> to vector<8x16x128xf32>
    %79 = vector.broadcast %62 : vector<1x16x128xf32> to vector<8x16x128xf32>
    %80 = arith.mulf %78, %79 : vector<8x16x128xf32>
    %cst_22 = arith.constant dense<0.000000e+00> : vector<8x128xf32>
    %81 = vector.multi_reduction <add>, %80, %cst_22 [1] : vector<8x16x128xf32> to vector<8x128xf32>
    %c0_23 = arith.constant 0 : index
    %c0_24 = arith.constant 0 : index
    %c0_25 = arith.constant 0 : index
    %82 = vector.load %arg4[%c0_23, %c0_24, %c0_25] : memref<1x32x128xf32, #tpu.memory_space<vmem>>, vector<1x8x128xf32>
    %83 = vector.shape_cast %82 : vector<1x8x128xf32> to vector<8x128xf32>
    %84 = vector.shape_cast %81 : vector<8x128xf32> to vector<1x8x128xf32>
    tpu.vector_store %arg4[%c0_23, %c0_24, %c0_25], %84 {strides = array<i32>} : memref<1x32x128xf32, #tpu.memory_space<vmem>>, vector<1x8x128xf32>,
    %c0_26 = arith.constant 0 : index
    %c128 = arith.constant 128 : index
    %c0_27 = arith.constant 0 : index
    %85 = vector.load %arg3[%c0_26, %c128, %c0_27] : memref<1x512x16xf32, #tpu.memory_space<vmem>>, vector<1x128x16xf32>
    %86 = vector.shape_cast %85 : vector<1x128x16xf32> to vector<128x16xf32>
    %87 = arith.truncf %86 : vector<128x16xf32> to vector<128x16xbf16>
    %88 = arith.extf %87 : vector<128x16xbf16> to vector<128x16xf32>
    %89 = arith.subf %86, %88 : vector<128x16xf32>
    %90 = arith.truncf %89 : vector<128x16xf32> to vector<128x16xbf16>
    %cst_28 = arith.constant dense<0.000000e+00> : vector<128x128xf32>
    %91 = tpu.matmul %87, %63, %cst_28 {dimension_numbers = #tpu.dot_dimension_numbers<[1], [0], [0], [1], [0, 0, 1, 1], [], []>} : vector<128x16xbf16>, vector<16x128xbf16>, vector<128x128xf32> -> vector<128x128xf32>
    %cst_29 = arith.constant dense<0.000000e+00> : vector<128x128xf32>
    %92 = tpu.matmul %87, %66, %cst_29 {dimension_numbers = #tpu.dot_dimension_numbers<[1], [0], [0], [1], [0, 0, 1, 1], [], []>} : vector<128x16xbf16>, vector<16x128xbf16>, vector<128x128xf32> -> vector<128x128xf32>
    %93 = arith.addf %91, %92 : vector<128x128xf32>
    %cst_30 = arith.constant dense<0.000000e+00> : vector<128x128xf32>
    %94 = tpu.matmul %90, %63, %cst_30 {dimension_numbers = #tpu.dot_dimension_numbers<[1], [0], [0], [1], [0, 0, 1, 1], [], []>} : vector<128x16xbf16>, vector<16x128xbf16>, vector<128x128xf32> -> vector<128x128xf32>
    %95 = arith.addf %93, %94 : vector<128x128xf32>
    %96 = vector.shape_cast %95 : vector<128x128xf32> to vector<8x16x128xf32>
    %97 = vector.broadcast %62 : vector<1x16x128xf32> to vector<8x16x128xf32>
    %98 = arith.mulf %96, %97 : vector<8x16x128xf32>
    %cst_31 = arith.constant dense<0.000000e+00> : vector<8x128xf32>
    %99 = vector.multi_reduction <add>, %98, %cst_31 [1] : vector<8x16x128xf32> to vector<8x128xf32>
    %c0_32 = arith.constant 0 : index
    %c8 = arith.constant 8 : index
    %c0_33 = arith.constant 0 : index
    %100 = vector.load %arg4[%c0_32, %c8, %c0_33] : memref<1x32x128xf32, #tpu.memory_space<vmem>>, vector<1x8x128xf32>
    %101 = vector.shape_cast %100 : vector<1x8x128xf32> to vector<8x128xf32>
    %102 = vector.shape_cast %99 : vector<8x128xf32> to vector<1x8x128xf32>
    tpu.vector_store %arg4[%c0_32, %c8, %c0_33], %102 {strides = array<i32>} : memref<1x32x128xf32, #tpu.memory_space<vmem>>, vector<1x8x128xf32>,
    %c0_34 = arith.constant 0 : index
    %c256 = arith.constant 256 : index
    %c0_35 = arith.constant 0 : index
    %103 = vector.load %arg3[%c0_34, %c256, %c0_35] : memref<1x512x16xf32, #tpu.memory_space<vmem>>, vector<1x128x16xf32>
    %104 = vector.shape_cast %103 : vector<1x128x16xf32> to vector<128x16xf32>
    %105 = arith.truncf %104 : vector<128x16xf32> to vector<128x16xbf16>
    %106 = arith.extf %105 : vector<128x16xbf16> to vector<128x16xf32>
    %107 = arith.subf %104, %106 : vector<128x16xf32>
    %108 = arith.truncf %107 : vector<128x16xf32> to vector<128x16xbf16>
    %cst_36 = arith.constant dense<0.000000e+00> : vector<128x128xf32>
    %109 = tpu.matmul %105, %63, %cst_36 {dimension_numbers = #tpu.dot_dimension_numbers<[1], [0], [0], [1], [0, 0, 1, 1], [], []>} : vector<128x16xbf16>, vector<16x128xbf16>, vector<128x128xf32> -> vector<128x128xf32>
    %cst_37 = arith.constant dense<0.000000e+00> : vector<128x128xf32>
    %110 = tpu.matmul %105, %66, %cst_37 {dimension_numbers = #tpu.dot_dimension_numbers<[1], [0], [0], [1], [0, 0, 1, 1], [], []>} : vector<128x16xbf16>, vector<16x128xbf16>, vector<128x128xf32> -> vector<128x128xf32>
    %111 = arith.addf %109, %110 : vector<128x128xf32>
    %cst_38 = arith.constant dense<0.000000e+00> : vector<128x128xf32>
    %112 = tpu.matmul %108, %63, %cst_38 {dimension_numbers = #tpu.dot_dimension_numbers<[1], [0], [0], [1], [0, 0, 1, 1], [], []>} : vector<128x16xbf16>, vector<16x128xbf16>, vector<128x128xf32> -> vector<128x128xf32>
    %113 = arith.addf %111, %112 : vector<128x128xf32>
    %114 = vector.shape_cast %113 : vector<128x128xf32> to vector<8x16x128xf32>
    %115 = vector.broadcast %62 : vector<1x16x128xf32> to vector<8x16x128xf32>
    %116 = arith.mulf %114, %115 : vector<8x16x128xf32>
    %cst_39 = arith.constant dense<0.000000e+00> : vector<8x128xf32>
    %117 = vector.multi_reduction <add>, %116, %cst_39 [1] : vector<8x16x128xf32> to vector<8x128xf32>
    %c0_40 = arith.constant 0 : index
    %c16 = arith.constant 16 : index
    %c0_41 = arith.constant 0 : index
    %118 = vector.load %arg4[%c0_40, %c16, %c0_41] : memref<1x32x128xf32, #tpu.memory_space<vmem>>, vector<1x8x128xf32>
    %119 = vector.shape_cast %118 : vector<1x8x128xf32> to vector<8x128xf32>
    %120 = vector.shape_cast %117 : vector<8x128xf32> to vector<1x8x128xf32>
    tpu.vector_store %arg4[%c0_40, %c16, %c0_41], %120 {strides = array<i32>} : memref<1x32x128xf32, #tpu.memory_space<vmem>>, vector<1x8x128xf32>,
    %c0_42 = arith.constant 0 : index
    %c384 = arith.constant 384 : index
    %c0_43 = arith.constant 0 : index
    %121 = vector.load %arg3[%c0_42, %c384, %c0_43] : memref<1x512x16xf32, #tpu.memory_space<vmem>>, vector<1x128x16xf32>
    %122 = vector.shape_cast %121 : vector<1x128x16xf32> to vector<128x16xf32>
    %123 = arith.truncf %122 : vector<128x16xf32> to vector<128x16xbf16>
    %124 = arith.extf %123 : vector<128x16xbf16> to vector<128x16xf32>
    %125 = arith.subf %122, %124 : vector<128x16xf32>
    %126 = arith.truncf %125 : vector<128x16xf32> to vector<128x16xbf16>
    %cst_44 = arith.constant dense<0.000000e+00> : vector<128x128xf32>
    %127 = tpu.matmul %123, %63, %cst_44 {dimension_numbers = #tpu.dot_dimension_numbers<[1], [0], [0], [1], [0, 0, 1, 1], [], []>} : vector<128x16xbf16>, vector<16x128xbf16>, vector<128x128xf32> -> vector<128x128xf32>
    %cst_45 = arith.constant dense<0.000000e+00> : vector<128x128xf32>
    %128 = tpu.matmul %123, %66, %cst_45 {dimension_numbers = #tpu.dot_dimension_numbers<[1], [0], [0], [1], [0, 0, 1, 1], [], []>} : vector<128x16xbf16>, vector<16x128xbf16>, vector<128x128xf32> -> vector<128x128xf32>
    %129 = arith.addf %127, %128 : vector<128x128xf32>
    %cst_46 = arith.constant dense<0.000000e+00> : vector<128x128xf32>
    %130 = tpu.matmul %126, %63, %cst_46 {dimension_numbers = #tpu.dot_dimension_numbers<[1], [0], [0], [1], [0, 0, 1, 1], [], []>} : vector<128x16xbf16>, vector<16x128xbf16>, vector<128x128xf32> -> vector<128x128xf32>
    %131 = arith.addf %129, %130 : vector<128x128xf32>
    %132 = vector.shape_cast %131 : vector<128x128xf32> to vector<8x16x128xf32>
    %133 = vector.broadcast %62 : vector<1x16x128xf32> to vector<8x16x128xf32>
    %134 = arith.mulf %132, %133 : vector<8x16x128xf32>
    %cst_47 = arith.constant dense<0.000000e+00> : vector<8x128xf32>
    %135 = vector.multi_reduction <add>, %134, %cst_47 [1] : vector<8x16x128xf32> to vector<8x128xf32>
    %c0_48 = arith.constant 0 : index
    %c24 = arith.constant 24 : index
    %c0_49 = arith.constant 0 : index
    %136 = vector.load %arg4[%c0_48, %c24, %c0_49] : memref<1x32x128xf32, #tpu.memory_space<vmem>>, vector<1x8x128xf32>
    %137 = vector.shape_cast %136 : vector<1x8x128xf32> to vector<8x128xf32>
    %138 = vector.shape_cast %135 : vector<8x128xf32> to vector<1x8x128xf32>
    tpu.vector_store %arg4[%c0_48, %c24, %c0_49], %138 {strides = array<i32>} : memref<1x32x128xf32, #tpu.memory_space<vmem>>, vector<1x8x128xf32>,
    return
  }
  func.func @transform_0(%arg0: i32, %arg1: i32) -> (i32, i32, i32) {
    %c0_i32 = arith.constant 0 : i32
    %c0_i32_0 = arith.constant 0 : i32
    return %arg0, %c0_i32, %arg1 : i32, i32, i32
  }
  func.func @transform_1(%arg0: i32, %arg1: i32) -> (i32, i32, i32) {
    %c0_i32 = arith.constant 0 : i32
    %c0_i32_0 = arith.constant 0 : i32
    %c0_i32_1 = arith.constant 0 : i32
    return %arg0, %c0_i32, %c0_i32_0 : i32, i32, i32
  }
  func.func @transform_2(%arg0: i32, %arg1: i32) -> (i32, i32, i32) {
    %c0_i32 = arith.constant 0 : i32
    %c0_i32_0 = arith.constant 0 : i32
    return %arg0, %c0_i32, %arg1 : i32, i32, i32
  }
}

</mosaic_0001>

<llo_original>
// kernel: _triplane_sample.1
$region0: #{_triplane_sample.1}
  #allocation0 [shape = 'u32[]', space=smem, size = 0x4, offset = 0x4, fixed_abs, tag = 'smem constant byte address 0x4 - core index']
  #allocation1 [shape = 'u32[72,128]{1,0:T(1,128)}', space=vmem, size = 0x9000, scoped, tag = 'internal scratch']
  %s0 = inlined_call_operand.vmem [shape: f32[6,2,128], index: 0, kind: input, shape index: {}]
  %s1 = inlined_call_operand.vmem [shape: f32[6,512,16], index: 1, kind: input, shape index: {}]
  %s2 = inlined_call_operand.vmem [shape: f32[6,32,128], index: 2, kind: output, shape index: {}]
  %s3 = sld [smem:[#allocation0]]
  $region41: #{_triplane_sample.1} parent=0
    _
  %s5 = ssub.s32 1, %s3
  %s6 = scalar_select 0, %s5, %s3
  loop: start=0, step=1, limit=8
  $region2: #{_triplane_sample.1} parent=0 // loop_pre_header
    _
  $region3: #{_triplane_sample.1} parent=0 // loop_header
    %s8 = sphi 0, %s12
    %p9 = scmp.ge.s32.totalorder %s8, 8
    %s15 = sphi 0, %s27
    %s16 = sphi 0, %s23
    %s17 = sphi 0, %s15
    %s18 = sphi 0, %s16
    %s19 = sphi 0, %s17
    %s20 = sphi 0, %s18
    %s32 = sphi 0, %s34
    %s35 = sphi 0, %s32
    %s36 = sphi 0, %s35
    %s52 = sphi 0, %s36
    %s58 = sphi 0, %s60
    %s61 = sphi 0, %s58
    %s62 = sphi 0, %s61
    %s78 = sphi 0, %s62
    %s86 = sphi 0, %s88
    %s89 = sphi 0, %s86
    %s90 = sphi 0, %s89
    %s106 = sphi 0, %s90
  $region4: #{_triplane_sample.1} parent=0 // loop_header_branch
    %11 = sbr.rel (%p9) target = $region8
  $region5: #{_triplane_sample.1} parent=0 // loop_body
    %s13 = ssub.s32 %s8, 1
    %s14 = ssub.s32 %s8, 2
    %s21 = sadd.s32 1, %s16
    %p22 = scmp.ge.s32.totalorder %s21, 1
    %s23 = scalar_select %p22, 0, %s21
    %s24 = sadd.s32 1, %s15
    %s25 = scalar_select %p22, %s24, %s15
    %p26 = scmp.ge.s32.totalorder %s25, 6
    %s27 = scalar_select %p26, 0, %s25
    %s28 = ssub.s32 %s15, %s27
    %s29 = ssub.s32 %s16, %s23
    %s30 = sor.u32 %s28, %s29
    %p31 = scmp.eq.s32.totalorder %s30, 0
    %s33 = sadd.s32 %s32, 1
    %s34 = scalar_select %p31, %s32, %s33
    %p37 = pneg %p31
    %p38 = scmp.eq.s32.totalorder %s8, 5
    %p39 = por %p37, %p38
    %p40 = scmp.ne.s32.totalorder %s32, %s35
    %p41 = scmp.eq.s32.totalorder %s8, 0
    %p42 = por %p40, %p41
    %p43 = scmp.ne.s32.totalorder %s32, %s35
    %p44 = scmp.eq.s32.totalorder %s13, 5
    %p45 = por %p43, %p44
    %p46 = scmp.ne.s32.totalorder %s35, %s36
    %p47 = scmp.eq.s32.totalorder %s13, 0
    %p48 = por %p46, %p47
    %p49 = scmp.ne.s32.totalorder %s35, %s36
    %p50 = scmp.eq.s32.totalorder %s14, 5
    %p51 = por %p49, %p50
    %p53 = scmp.ne.s32.totalorder %s36, %s52
    %p54 = scmp.eq.s32.totalorder %s14, 0
    %p55 = por %p53, %p54
    %s56 = ssub.s32 %s15, %s27
    %p57 = scmp.eq.s32.totalorder %s56, 0
    %s59 = sadd.s32 %s58, 1
    %s60 = scalar_select %p57, %s58, %s59
    %p63 = pneg %p57
    %p64 = scmp.eq.s32.totalorder %s8, 5
    %p65 = por %p63, %p64
    %p66 = scmp.ne.s32.totalorder %s58, %s61
    %p67 = scmp.eq.s32.totalorder %s8, 0
    %p68 = por %p66, %p67
    %p69 = scmp.ne.s32.totalorder %s58, %s61
    %p70 = scmp.eq.s32.totalorder %s13, 5
    %p71 = por %p69, %p70
    %p72 = scmp.ne.s32.totalorder %s61, %s62
    %p73 = scmp.eq.s32.totalorder %s13, 0
    %p74 = por %p72, %p73
    %p75 = scmp.ne.s32.totalorder %s61, %s62
    %p76 = scmp.eq.s32.totalorder %s14, 5
    %p77 = por %p75, %p76
    %p79 = scmp.ne.s32.totalorder %s62, %s78
    %p80 = scmp.eq.s32.totalorder %s14, 0
    %p81 = por %p79, %p80
    %s82 = ssub.s32 %s15, %s27
    %s83 = ssub.s32 %s16, %s23
    %s84 = sor.u32 %s82, %s83
    %p85 = scmp.eq.s32.totalorder %s84, 0
    %s87 = sadd.s32 %s86, 1
    %s88 = scalar_select %p85, %s86, %s87
    %p91 = pneg %p85
    %p92 = scmp.eq.s32.totalorder %s8, 5
    %p93 = por %p91, %p92
    %p94 = scmp.ne.s32.totalorder %s86, %s89
    %p95 = scmp.eq.s32.totalorder %s8, 0
    %p96 = por %p94, %p95
    %p97 = scmp.ne.s32.totalorder %s86, %s89
    %p98 = scmp.eq.s32.totalorder %s13, 5
    %p99 = por %p97, %p98
    %p100 = scmp.ne.s32.totalorder %s89, %s90
    %p101 = scmp.eq.s32.totalorder %s13, 0
    %p102 = por %p100, %p101
    %p103 = scmp.ne.s32.totalorder %s89, %s90
    %p104 = scmp.eq.s32.totalorder %s14, 5
    %p105 = por %p103, %p104
    %p107 = scmp.ne.s32.totalorder %s90, %s106
    %p108 = scmp.eq.s32.totalorder %s14, 0
    %p109 = por %p107, %p108
    %p110 = scmp.le.s32.totalorder 1, %s8
    %p111 = scmp.lt.s32.totalorder %s8, 7
    %p112 = pnand %p110, %p111
    %p113 = pneg %p112
    // Predicated region
    $region9: #{_triplane_sample.1} parent=5 // pred_check
      _
    $region10: #{_triplane_sample.1} parent=5 // pred_check_branch
      %115 = sbr.rel (%p112) target = $region12
    $region11: #{_triplane_sample.1} parent=5 // pred_region
      %s116 = ssub.s32 %s8, 1
    $region12: #{_triplane_sample.1} parent=5 // pred_fallthru
      _
    %p117 = scmp.lt.s32.totalorder %s8, 6
    // Predicated region
    $region13: #{_triplane_sample.1} parent=5 // pred_check
      %p118 = pneg %p117
    $region14: #{_triplane_sample.1} parent=5 // pred_check_branch
      %120 = sbr.rel (%p118) target = $region16
    $region15: #{_triplane_sample.1} parent=5 // pred_region
      // Predicated region
      $region17: #{_triplane_sample.1} parent=15 // pred_check
        %p121 = pneg %p42
      $region18: #{_triplane_sample.1} parent=15 // pred_check_branch
        %123 = sbr.rel (%p121) target = $region20
      $region19: #{_triplane_sample.1} parent=15 // pred_region
        %p124 = scmp.lt.s32.totalorder %s15, 5
        %s125 = scalar_select %p124, %s15, 5
        %p126 = scmp.lt.s32.totalorder %s16, 0
        %s127 = scalar_select %p126, %s16, 0
        %s128 = sadd.s32 %s127, %s125
        %s129 = smul.addr %s128, 2
        %s130 = scalar_lea.vmem %s0, %s129
      $region20: #{_triplane_sample.1} parent=15 // pred_fallthru
        _
      // Predicated region
      $region21: #{_triplane_sample.1} parent=15 // pred_check
        %p131 = pneg %p68
      $region22: #{_triplane_sample.1} parent=15 // pred_check_branch
        %133 = sbr.rel (%p131) target = $region24
      $region23: #{_triplane_sample.1} parent=15 // pred_region
        %p134 = scmp.lt.s32.totalorder %s15, 5
        %s135 = scalar_select %p134, %s15, 5
        %s136 = smul.addr %s135, 64
        %s137 = smul.addr %s136, 8
        %s138 = scalar_lea.vmem %s1, %s137
      $region24: #{_triplane_sample.1} parent=15 // pred_fallthru
        _
    $region16: #{_triplane_sample.1} parent=5 // pred_fallthru
      _
    %p139 = scmp.le.s32.totalorder 1, %s8
    %p140 = scmp.lt.s32.totalorder %s8, 7
    %p141 = pnand %p139, %p140
    %p142 = pneg %p141
    // Predicated region
    $region25: #{_triplane_sample.1} parent=5 // pred_check
      _
    $region26: #{_triplane_sample.1} parent=5 // pred_check_branch
      %144 = sbr.rel (%p141) target = $region28
    $region27: #{_triplane_sample.1} parent=5 // pred_region
      %s145 = ssub.s32 %s8, 1
      %p146 = scmp.lt.s32.totalorder %s17, 5
      %s147 = scalar_select %p146, %s17, 5
      %p148 = scmp.lt.s32.totalorder %s18, 0
      %s149 = scalar_select %p148, %s18, 0
      %s150 = sadd.s32 %s149, %s147
      %s151 = smul.addr %s150, 2
      %s152 = scalar_lea.vmem %s0, %s151
      %p153 = pneg %p48
      %p154 = pneg %p45
      %p155 = scmp.lt.s32.totalorder %s17, 5
      %s156 = scalar_select %p155, %s17, 5
      %s157 = smul.addr %s156, 64
      %s158 = smul.addr %s157, 8
      %s159 = scalar_lea.vmem %s1, %s158
      %p160 = pneg %p74
      %p161 = pneg %p71
      %p162 = pneg %p102
      %p163 = pneg %p99
      %p164 = scmp.lt.s32.totalorder %s17, 5
      %s165 = scalar_select %p164, %s17, 5
      %p166 = scmp.lt.s32.totalorder %s18, 0
      %s167 = scalar_select %p166, %s18, 0
      %s168 = smul.addr %s165, 4
      %s169 = sadd.s32 %s167, %s168
      %s170 = smul.addr %s169, 8
      %s171 = scalar_lea.vmem %s2, %s170
      %p172 = scmp.lt.s32.totalorder %s17, 5
      %s173 = scalar_select %p172, %s17, 5
      %p174 = scmp.lt.s32.totalorder %s18, 0
      %s175 = scalar_select %p174, %s18, 0
      %s176 = sadd.s32 %s175, %s173
      %s177 = smul.addr %s176, 2
      %s178 = scalar_lea.vmem %s0, %s177
      %p179 = scmp.lt.s32.totalorder %s17, 5
      %s180 = scalar_select %p179, %s17, 5
      %s181 = smul.addr %s180, 64
      %s182 = smul.addr %s181, 8
      %s183 = scalar_lea.vmem %s1, %s182
      %p184 = scmp.lt.s32.totalorder %s17, 5
      %s185 = scalar_select %p184, %s17, 5
      %p186 = scmp.lt.s32.totalorder %s18, 0
      %s187 = scalar_select %p186, %s18, 0
      %s188 = smul.addr %s185, 4
      %s189 = sadd.s32 %s187, %s188
      %s190 = smul.addr %s189, 8
      %s191 = scalar_lea.vmem %s2, %s190
      %v193 = vld [vmem:[%s178] sm:$0x3]
      %v194 = vadd.f32 %v193, 1.0
      %v195 = vmul.f32 %v194, 16.0
      %v196 = vsub.f32 %v195, 1.0
      %v197 = vmul.f32 %v196, 0.5
      %v198 = vfloor.f32 %v197
      %v199 = vsub.f32 %v197, %v198
      %v200 = vsub.f32 1.0, %v199
      %v201 = vcvt.f32.s32.to.zero.pseudo %v198
      %v202 = vadd.s32 %v201, 1
      %v203 = vlaneseq
      %v204 = vshrl.u32 %v203, 7
      %v205 = vadd.s32 %v204, 8
      %v206 = vperm.slane %v201, 0
      %vm207 = vcmp.eq.s32.totalorder %v204, %v206
      %vm208 = vcmp.eq.s32.totalorder %v205, %v206
      %v209 = vperm.slane %v200, 0
      %v210 = vsel %vm207, %v209, 0.0
      %v211 = vsel %vm208, %v209, 0.0
      %v212 = vperm.slane %v202, 0
      %vm213 = vcmp.eq.s32.totalorder %v204, %v212
      %vm214 = vcmp.eq.s32.totalorder %v205, %v212
      %v215 = vperm.slane %v199, 0
      %v216 = vsel %vm213, %v215, 0.0
      %v217 = vsel %vm214, %v215, 0.0
      %v218 = vadd.f32 %v210, %v216
      %v219 = vadd.f32 %v211, %v217
      %v220 = vperm.slane %v201, 1
      %vm221 = vcmp.eq.s32.totalorder %v204, %v220
      %vm222 = vcmp.eq.s32.totalorder %v205, %v220
      %v223 = vperm.slane %v200, 1
      %v224 = vsel %vm221, %v223, 0.0
      %v225 = vsel %vm222, %v223, 0.0
      %v226 = vperm.slane %v202, 1
      %vm227 = vcmp.eq.s32.totalorder %v204, %v226
      %vm228 = vcmp.eq.s32.totalorder %v205, %v226
      %v229 = vperm.slane %v199, 1
      %v230 = vsel %vm227, %v229, 0.0
      %v231 = vsel %vm228, %v229, 0.0
      %v232 = vadd.f32 %v224, %v230
      %v233 = vadd.f32 %v225, %v231
      %v234 = vpack.c.bf16 %v218, %v218
      %v235 = vpack.c.bf16 %v219, %v219
      %v236 = vunpack.c.l.bf16 %v234
      %v237 = vunpack.c.l.bf16 %v235
      %v238 = vsub.f32 %v218, %v236
      %v239 = vsub.f32 %v219, %v237
      %v240 = vpack.c.bf16 %v239, %v238
      %v241 = vld [vmem:[%s183] sm:$0xff]
      %v242 = vld [vmem:[%s183 + $0x8] sm:$0xff]
      %v243 = vld [vmem:[%s183 + $0x10] sm:$0xff]
      %v244 = vld [vmem:[%s183 + $0x18] sm:$0xff]
      %v245 = vld [vmem:[%s183 + $0x20] sm:$0xff]
      %v246 = vld [vmem:[%s183 + $0x28] sm:$0xff]
      %v247 = vld [vmem:[%s183 + $0x30] sm:$0xff]
      %v248 = vld [vmem:[%s183 + $0x38] sm:$0xff]
      %v249 = vld [vmem:[%s183 + $0x40] sm:$0xff]
      %v250 = vld [vmem:[%s183 + $0x48] sm:$0xff]
      %v251 = vld [vmem:[%s183 + $0x50] sm:$0xff]
      %v252 = vld [vmem:[%s183 + $0x58] sm:$0xff]
      %v253 = vld [vmem:[%s183 + $0x60] sm:$0xff]
      %v254 = vld [vmem:[%s183 + $0x68] sm:$0xff]
      %v255 = vld [vmem:[%s183 + $0x70] sm:$0xff]
      %v256 = vld [vmem:[%s183 + $0x78] sm:$0xff]
      %v257 = vpack.c.bf16 %v241, %v241
      %v258 = vpack.c.bf16 %v242, %v242
      %v259 = vpack.c.bf16 %v243, %v243
      %v260 = vpack.c.bf16 %v244, %v244
      %v261 = vpack.c.bf16 %v245, %v245
      %v262 = vpack.c.bf16 %v246, %v246
      %v263 = vpack.c.bf16 %v247, %v247
      %v264 = vpack.c.bf16 %v248, %v248
      %v265 = vpack.c.bf16 %v249, %v249
      %v266 = vpack.c.bf16 %v250, %v250
      %v267 = vpack.c.bf16 %v251, %v251
      %v268 = vpack.c.bf16 %v252, %v252
      %v269 = vpack.c.bf16 %v253, %v253
      %v270 = vpack.c.bf16 %v254, %v254
      %v271 = vpack.c.bf16 %v255, %v255
      %v272 = vpack.c.bf16 %v256, %v256
      %v273 = vunpack.c.l.bf16 %v257
      %v274 = vunpack.c.l.bf16 %v258
      %v275 = vunpack.c.l.bf16 %v259
      %v276 = vunpack.c.l.bf16 %v260
      %v277 = vunpack.c.l.bf16 %v261
      %v278 = vunpack.c.l.bf16 %v262
      %v279 = vunpack.c.l.bf16 %v263
      %v280 = vunpack.c.l.bf16 %v264
      %v281 = vunpack.c.l.bf16 %v265
      %v282 = vunpack.c.l.bf16 %v266
      %v283 = vunpack.c.l.bf16 %v267
      %v284 = vunpack.c.l.bf16 %v268
      %v285 = vunpack.c.l.bf16 %v269
      %v286 = vunpack.c.l.bf16 %v270
      %v287 = vunpack.c.l.bf16 %v271
      %v288 = vunpack.c.l.bf16 %v272
      %v289 = vsub.f32 %v241, %v273
      %v290 = vsub.f32 %v242, %v274
      %v291 = vsub.f32 %v243, %v275
      %v292 = vsub.f32 %v244, %v276
      %v293 = vsub.f32 %v245, %v277
      %v294 = vsub.f32 %v246, %v278
      %v295 = vsub.f32 %v247, %v279
      %v296 = vsub.f32 %v248, %v280
      %v297 = vsub.f32 %v249, %v281
      %v298 = vsub.f32 %v250, %v282
      %v299 = vsub.f32 %v251, %v283
      %v300 = vsub.f32 %v252, %v284
      %v301 = vsub.f32 %v253, %v285
      %v302 = vsub.f32 %v254, %v286
      %v303 = vsub.f32 %v255, %v287
      %v304 = vsub.f32 %v256, %v288
      %v305 = vpack.c.bf16 %v290, %v289
      %v306 = vpack.c.bf16 %v292, %v291
      %v307 = vpack.c.bf16 %v294, %v293
      %v308 = vpack.c.bf16 %v296, %v295
      %v309 = vpack.c.bf16 %v298, %v297
      %v310 = vpack.c.bf16 %v300, %v299
      %v311 = vpack.c.bf16 %v302, %v301
      %v312 = vpack.c.bf16 %v304, %v303
      %v329 = vunpack.c.l.b16 %v257
      %v330 = vunpack.c.l.b16 %v258
      %v331 = vunpack.c.l.b16 %v259
      %v332 = vunpack.c.l.b16 %v260
      %v333 = vunpack.c.l.b16 %v261
      %v334 = vunpack.c.l.b16 %v262
      %v335 = vunpack.c.l.b16 %v263
      %v336 = vunpack.c.l.b16 %v264
      %v337 = vunpack.c.l.b16 %v265
      %v338 = vunpack.c.l.b16 %v266
      %v339 = vunpack.c.l.b16 %v267
      %v340 = vunpack.c.l.b16 %v268
      %v341 = vunpack.c.l.b16 %v269
      %v342 = vunpack.c.l.b16 %v270
      %v343 = vunpack.c.l.b16 %v271
      %v344 = vunpack.c.l.b16 %v272
      %v345 = vpack.c.b16 %v330, %v329
      %v346 = vpack.c.b16 %v332, %v331
      %v347 = vpack.c.b16 %v334, %v333
      %v348 = vpack.c.b16 %v336, %v335
      %v349 = vpack.c.b16 %v338, %v337
      %v350 = vpack.c.b16 %v340, %v339
      %v351 = vpack.c.b16 %v342, %v341
      %v352 = vpack.c.b16 %v344, %v343
      %vm353 = vcmask 130048
      %v355 = vsel %vm353, %v345, 0
      %v358 = vsel %vm353, %v346, 0
      %v361 = vsel %vm353, %v347, 0
      %v364 = vsel %vm353, %v348, 0
      %v367 = vsel %vm353, %v349, 0
      %v370 = vsel %vm353, %v350, 0
      %v373 = vsel %vm353, %v351, 0
      %v376 = vsel %vm353, %v352, 0
      %378 = vmatpush.bf16.msra.mxu0 0
      %379 = vmatpush.bf16.msra.mxu0 0
      %380 = vmatpush.bf16.msra.mxu0 0
      %381 = vmatpush.bf16.msra.mxu0 0
      %382 = vmatpush.bf16.msra.mxu0 0
      %383 = vmatpush.bf16.msra.mxu0 0
      %384 = vmatpush.bf16.msra.mxu0 0
      %385 = vmatpush.bf16.msra.mxu0 %v240
      %386 = vmatmul.bf16.gmra.mxu0 %v355
      %v387 = vpop.f32.mrf.mxu0
      %v388 = vadd.f32 0.0, %v387
      %v389 = vpop.f32.mrf.mxu0
      %v390 = vadd.f32 0.0, %v389
      %391 = vmatmul.bf16.gmra.mxu0 %v358
      %v392 = vpop.f32.mrf.mxu0
      %v393 = vadd.f32 0.0, %v392
      %v394 = vpop.f32.mrf.mxu0
      %v395 = vadd.f32 0.0, %v394
      %396 = vmatmul.bf16.gmra.mxu0 %v361
      %v397 = vpop.f32.mrf.mxu0
      %v398 = vadd.f32 0.0, %v397
      %v399 = vpop.f32.mrf.mxu0
      %v400 = vadd.f32 0.0, %v399
      %401 = vmatmul.bf16.gmra.mxu0 %v364
      %v402 = vpop.f32.mrf.mxu0
      %v403 = vadd.f32 0.0, %v402
      %v404 = vpop.f32.mrf.mxu0
      %v405 = vadd.f32 0.0, %v404
      %406 = vmatmul.bf16.gmra.mxu0 %v367
      %v407 = vpop.f32.mrf.mxu0
      %v408 = vadd.f32 0.0, %v407
      %v409 = vpop.f32.mrf.mxu0
      %v410 = vadd.f32 0.0, %v409
      %411 = vmatmul.bf16.gmra.mxu0 %v370
      %v412 = vpop.f32.mrf.mxu0
      %v413 = vadd.f32 0.0, %v412
      %v414 = vpop.f32.mrf.mxu0
      %v415 = vadd.f32 0.0, %v414
      %416 = vmatmul.bf16.gmra.mxu0 %v373
      %v417 = vpop.f32.mrf.mxu0
      %v418 = vadd.f32 0.0, %v417
      %v419 = vpop.f32.mrf.mxu0
      %v420 = vadd.f32 0.0, %v419
      %421 = vmatmul.bf16.gmra.mxu0 %v376
      %v422 = vpop.f32.mrf.mxu0
      %v423 = vadd.f32 0.0, %v422
      %v424 = vpop.f32.mrf.mxu0
      %v425 = vadd.f32 0.0, %v424
      %426 = vdwg.mxu0
      %v429 = vunpack.c.l.b16 %v234
      %v430 = vunpack.c.l.b16 %v235
      %v431 = vpack.c.b16 %v430, %v429
      %433 = vmatpush.bf16.msra.mxu0 0
      %434 = vmatpush.bf16.msra.mxu0 0
      %435 = vmatpush.bf16.msra.mxu0 0
      %436 = vmatpush.bf16.msra.mxu0 0
      %437 = vmatpush.bf16.msra.mxu0 0
      %438 = vmatpush.bf16.msra.mxu0 0
      %439 = vmatpush.bf16.msra.mxu0 0
      %440 = vmatpush.bf16.msra.mxu0 %v431
      %441 = vmatmul.bf16.gmra.mxu0 %v355
      %v442 = vpop.f32.mrf.mxu0
      %v443 = vadd.f32 %v388, %v442
      %v444 = vpop.f32.mrf.mxu0
      %v445 = vadd.f32 %v390, %v444
      %446 = vmatmul.bf16.gmra.mxu0 %v358
      %v447 = vpop.f32.mrf.mxu0
      %v448 = vadd.f32 %v393, %v447
      %v449 = vpop.f32.mrf.mxu0
      %v450 = vadd.f32 %v395, %v449
      %451 = vmatmul.bf16.gmra.mxu0 %v361
      %v452 = vpop.f32.mrf.mxu0
      %v453 = vadd.f32 %v398, %v452
      %v454 = vpop.f32.mrf.mxu0
      %v455 = vadd.f32 %v400, %v454
      %456 = vmatmul.bf16.gmra.mxu0 %v364
      %v457 = vpop.f32.mrf.mxu0
      %v458 = vadd.f32 %v403, %v457
      %v459 = vpop.f32.mrf.mxu0
      %v460 = vadd.f32 %v405, %v459
      %461 = vmatmul.bf16.gmra.mxu0 %v367
      %v462 = vpop.f32.mrf.mxu0
      %v463 = vadd.f32 %v408, %v462
      %v464 = vpop.f32.mrf.mxu0
      %v465 = vadd.f32 %v410, %v464
      %466 = vmatmul.bf16.gmra.mxu0 %v370
      %v467 = vpop.f32.mrf.mxu0
      %v468 = vadd.f32 %v413, %v467
      %v469 = vpop.f32.mrf.mxu0
      %v470 = vadd.f32 %v415, %v469
      %471 = vmatmul.bf16.gmra.mxu0 %v373
      %v472 = vpop.f32.mrf.mxu0
      %v473 = vadd.f32 %v418, %v472
      %v474 = vpop.f32.mrf.mxu0
      %v475 = vadd.f32 %v420, %v474
      %476 = vmatmul.bf16.gmra.mxu0 %v376
      %v477 = vpop.f32.mrf.mxu0
      %v478 = vadd.f32 %v423, %v477
      %v479 = vpop.f32.mrf.mxu0
      %v480 = vadd.f32 %v425, %v479
      %481 = vdwg.mxu0
      %v483 = vsel %vm353, %v305, 0
      %v486 = vsel %vm353, %v306, 0
      %v489 = vsel %vm353, %v307, 0
      %v492 = vsel %vm353, %v308, 0
      %v495 = vsel %vm353, %v309, 0
      %v498 = vsel %vm353, %v310, 0
      %v501 = vsel %vm353, %v311, 0
      %v504 = vsel %vm353, %v312, 0
      %506 = vmatpush.bf16.msra.mxu0 0
      %507 = vmatpush.bf16.msra.mxu0 0
      %508 = vmatpush.bf16.msra.mxu0 0
      %509 = vmatpush.bf16.msra.mxu0 0
      %510 = vmatpush.bf16.msra.mxu0 0
      %511 = vmatpush.bf16.msra.mxu0 0
      %512 = vmatpush.bf16.msra.mxu0 0
      %513 = vmatpush.bf16.msra.mxu0 %v431
      %514 = vmatmul.bf16.gmra.mxu0 %v483
      %v515 = vpop.f32.mrf.mxu0
      %v516 = vadd.f32 0.0, %v515
      %v517 = vpop.f32.mrf.mxu0
      %v518 = vadd.f32 0.0, %v517
      %519 = vmatmul.bf16.gmra.mxu0 %v486
      %v520 = vpop.f32.mrf.mxu0
      %v521 = vadd.f32 0.0, %v520
      %v522 = vpop.f32.mrf.mxu0
      %v523 = vadd.f32 0.0, %v522
      %524 = vmatmul.bf16.gmra.mxu0 %v489
      %v525 = vpop.f32.mrf.mxu0
      %v526 = vadd.f32 0.0, %v525
      %v527 = vpop.f32.mrf.mxu0
      %v528 = vadd.f32 0.0, %v527
      %529 = vmatmul.bf16.gmra.mxu0 %v492
      %v530 = vpop.f32.mrf.mxu0
      %v531 = vadd.f32 0.0, %v530
      %v532 = vpop.f32.mrf.mxu0
      %v533 = vadd.f32 0.0, %v532
      %534 = vmatmul.bf16.gmra.mxu0 %v495
      %v535 = vpop.f32.mrf.mxu0
      %v536 = vadd.f32 0.0, %v535
      %v537 = vpop.f32.mrf.mxu0
      %v538 = vadd.f32 0.0, %v537
      %539 = vmatmul.bf16.gmra.mxu0 %v498
      %v540 = vpop.f32.mrf.mxu0
      %v541 = vadd.f32 0.0, %v540
      %v542 = vpop.f32.mrf.mxu0
      %v543 = vadd.f32 0.0, %v542
      %544 = vmatmul.bf16.gmra.mxu0 %v501
      %v545 = vpop.f32.mrf.mxu0
      %v546 = vadd.f32 0.0, %v545
      %v547 = vpop.f32.mrf.mxu0
      %v548 = vadd.f32 0.0, %v547
      %549 = vmatmul.bf16.gmra.mxu0 %v504
      %v550 = vpop.f32.mrf.mxu0
      %v551 = vadd.f32 0.0, %v550
      %v552 = vpop.f32.mrf.mxu0
      %v553 = vadd.f32 0.0, %v552
      %554 = vdwg.mxu0
      %v555 = vadd.f32 %v443, %v516
      %v556 = vadd.f32 %v445, %v518
      %v557 = vadd.f32 %v448, %v521
      %v558 = vadd.f32 %v450, %v523
      %v559 = vadd.f32 %v453, %v526
      %v560 = vadd.f32 %v455, %v528
      %v561 = vadd.f32 %v458, %v531
      %v562 = vadd.f32 %v460, %v533
      %v563 = vadd.f32 %v463, %v536
      %v564 = vadd.f32 %v465, %v538
      %v565 = vadd.f32 %v468, %v541
      %v566 = vadd.f32 %v470, %v543
      %v567 = vadd.f32 %v473, %v546
      %v568 = vadd.f32 %v475, %v548
      %v569 = vadd.f32 %v478, %v551
      %v570 = vadd.f32 %v480, %v553
      %v571 = vmul.f32 %v555, %v232
      %v572 = vmul.f32 %v556, %v233
      %v573 = vmul.f32 %v557, %v232
      %v574 = vmul.f32 %v558, %v233
      %v575 = vmul.f32 %v559, %v232
      %v576 = vmul.f32 %v560, %v233
      %v577 = vmul.f32 %v561, %v232
      %v578 = vmul.f32 %v562, %v233
      %v579 = vmul.f32 %v563, %v232
      %v580 = vmul.f32 %v564, %v233
      %v581 = vmul.f32 %v565, %v232
      %v582 = vmul.f32 %v566, %v233
      %v583 = vmul.f32 %v567, %v232
      %v584 = vmul.f32 %v568, %v233
      %v585 = vmul.f32 %v569, %v232
      %v586 = vmul.f32 %v570, %v233
      %v587 = vadd.f32 %v571, %v572
      %v588 = vrot.slane %v587, 4
      %v589 = vadd.f32 %v587, %v588
      %v590 = vrot.slane %v589, 2
      %v591 = vadd.f32 %v589, %v590
      %v592 = vrot.slane %v591, 1
      %v593 = vadd.f32 %v591, %v592
      %v594 = vadd.f32 %v573, %v574
      %v595 = vrot.slane %v594, 4
      %v596 = vadd.f32 %v594, %v595
      %v597 = vrot.slane %v596, 2
      %v598 = vadd.f32 %v596, %v597
      %v599 = vrot.slane %v598, 1
      %v600 = vadd.f32 %v598, %v599
      %v601 = vadd.f32 %v575, %v576
      %v602 = vrot.slane %v601, 4
      %v603 = vadd.f32 %v601, %v602
      %v604 = vrot.slane %v603, 2
      %v605 = vadd.f32 %v603, %v604
      %v606 = vrot.slane %v605, 1
      %v607 = vadd.f32 %v605, %v606
      %v608 = vadd.f32 %v577, %v578
      %v609 = vrot.slane %v608, 4
      %v610 = vadd.f32 %v608, %v609
      %v611 = vrot.slane %v610, 2
      %v612 = vadd.f32 %v610, %v611
      %v613 = vrot.slane %v612, 1
      %v614 = vadd.f32 %v612, %v613
      %v615 = vadd.f32 %v579, %v580
      %v616 = vrot.slane %v615, 4
      %v617 = vadd.f32 %v615, %v616
      %v618 = vrot.slane %v617, 2
      %v619 = vadd.f32 %v617, %v618
      %v620 = vrot.slane %v619, 1
      %v621 = vadd.f32 %v619, %v620
      %v622 = vadd.f32 %v581, %v582
      %v623 = vrot.slane %v622, 4
      %v624 = vadd.f32 %v622, %v623
      %v625 = vrot.slane %v624, 2
      %v626 = vadd.f32 %v624, %v625
      %v627 = vrot.slane %v626, 1
      %v628 = vadd.f32 %v626, %v627
      %v629 = vadd.f32 %v583, %v584
      %v630 = vrot.slane %v629, 4
      %v631 = vadd.f32 %v629, %v630
      %v632 = vrot.slane %v631, 2
      %v633 = vadd.f32 %v631, %v632
      %v634 = vrot.slane %v633, 1
      %v635 = vadd.f32 %v633, %v634
      %v636 = vadd.f32 %v585, %v586
      %v637 = vrot.slane %v636, 4
      %v638 = vadd.f32 %v636, %v637
      %v639 = vrot.slane %v638, 2
      %v640 = vadd.f32 %v638, %v639
      %v641 = vrot.slane %v640, 1
      %v642 = vadd.f32 %v640, %v641
      %vm651 = vcmask 1041409
      %v652 = vsel %vm651, %v600, %v593
      %vm653 = vcmask 1042434
      %v654 = vsel %vm653, %v607, %v652
      %vm655 = vcmask 1043459
      %v656 = vsel %vm655, %v614, %v654
      %vm657 = vcmask 1044484
      %v658 = vsel %vm657, %v621, %v656
      %vm659 = vcmask 1045509
      %v660 = vsel %vm659, %v628, %v658
      %vm661 = vcmask 1046534
      %v662 = vsel %vm661, %v635, %v660
      %vm663 = vcmask 1047559
      %v664 = vsel %vm663, %v642, %v662
      %666 = vst [vmem:[%s191] sm:$0xff] %v664
      %v667 = vld [vmem:[%s183 + $0x80] sm:$0xff]
      %v668 = vld [vmem:[%s183 + $0x88] sm:$0xff]
      %v669 = vld [vmem:[%s183 + $0x90] sm:$0xff]
      %v670 = vld [vmem:[%s183 + $0x98] sm:$0xff]
      %v671 = vld [vmem:[%s183 + $0xa0] sm:$0xff]
      %v672 = vld [vmem:[%s183 + $0xa8] sm:$0xff]
      %v673 = vld [vmem:[%s183 + $0xb0] sm:$0xff]
      %v674 = vld [vmem:[%s183 + $0xb8] sm:$0xff]
      %v675 = vld [vmem:[%s183 + $0xc0] sm:$0xff]
      %v676 = vld [vmem:[%s183 + $0xc8] sm:$0xff]
      %v677 = vld [vmem:[%s183 + $0xd0] sm:$0xff]
      %v678 = vld [vmem:[%s183 + $0xd8] sm:$0xff]
      %v679 = vld [vmem:[%s183 + $0xe0] sm:$0xff]
      %v680 = vld [vmem:[%s183 + $0xe8] sm:$0xff]
      %v681 = vld [vmem:[%s183 + $0xf0] sm:$0xff]
      %v682 = vld [vmem:[%s183 + $0xf8] sm:$0xff]
      %v683 = vpack.c.bf16 %v667, %v667
      %v684 = vpack.c.bf16 %v668, %v668
      %v685 = vpack.c.bf16 %v669, %v669
      %v686 = vpack.c.bf16 %v670, %v670
      %v687 = vpack.c.bf16 %v671, %v671
      %v688 = vpack.c.bf16 %v672, %v672
      %v689 = vpack.c.bf16 %v673, %v673
      %v690 = vpack.c.bf16 %v674, %v674
      %v691 = vpack.c.bf16 %v675, %v675
      %v692 = vpack.c.bf16 %v676, %v676
      %v693 = vpack.c.bf16 %v677, %v677
      %v694 = vpack.c.bf16 %v678, %v678
      %v695 = vpack.c.bf16 %v679, %v679
      %v696 = vpack.c.bf16 %v680, %v680
      %v697 = vpack.c.bf16 %v681, %v681
      %v698 = vpack.c.bf16 %v682, %v682
      %v699 = vunpack.c.l.bf16 %v683
      %v700 = vunpack.c.l.bf16 %v684
      %v701 = vunpack.c.l.bf16 %v685
      %v702 = vunpack.c.l.bf16 %v686
      %v703 = vunpack.c.l.bf16 %v687
      %v704 = vunpack.c.l.bf16 %v688
      %v705 = vunpack.c.l.bf16 %v689
      %v706 = vunpack.c.l.bf16 %v690
      %v707 = vunpack.c.l.bf16 %v691
      %v708 = vunpack.c.l.bf16 %v692
      %v709 = vunpack.c.l.bf16 %v693
      %v710 = vunpack.c.l.bf16 %v694
      %v711 = vunpack.c.l.bf16 %v695
      %v712 = vunpack.c.l.bf16 %v696
      %v713 = vunpack.c.l.bf16 %v697
      %v714 = vunpack.c.l.bf16 %v698
      %v715 = vsub.f32 %v667, %v699
      %v716 = vsub.f32 %v668, %v700
      %v717 = vsub.f32 %v669, %v701
      %v718 = vsub.f32 %v670, %v702
      %v719 = vsub.f32 %v671, %v703
      %v720 = vsub.f32 %v672, %v704
      %v721 = vsub.f32 %v673, %v705
      %v722 = vsub.f32 %v674, %v706
      %v723 = vsub.f32 %v675, %v707
      %v724 = vsub.f32 %v676, %v708
      %v725 = vsub.f32 %v677, %v709
      %v726 = vsub.f32 %v678, %v710
      %v727 = vsub.f32 %v679, %v711
      %v728 = vsub.f32 %v680, %v712
      %v729 = vsub.f32 %v681, %v713
      %v730 = vsub.f32 %v682, %v714
      %v731 = vpack.c.bf16 %v716, %v715
      %v732 = vpack.c.bf16 %v718, %v717
      %v733 = vpack.c.bf16 %v720, %v719
      %v734 = vpack.c.bf16 %v722, %v721
      %v735 = vpack.c.bf16 %v724, %v723
      %v736 = vpack.c.bf16 %v726, %v725
      %v737 = vpack.c.bf16 %v728, %v727
      %v738 = vpack.c.bf16 %v730, %v729
      %v755 = vunpack.c.l.b16 %v683
      %v756 = vunpack.c.l.b16 %v684
      %v757 = vunpack.c.l.b16 %v685
      %v758 = vunpack.c.l.b16 %v686
      %v759 = vunpack.c.l.b16 %v687
      %v760 = vunpack.c.l.b16 %v688
      %v761 = vunpack.c.l.b16 %v689
      %v762 = vunpack.c.l.b16 %v690
      %v763 = vunpack.c.l.b16 %v691
      %v764 = vunpack.c.l.b16 %v692
      %v765 = vunpack.c.l.b16 %v693
      %v766 = vunpack.c.l.b16 %v694
      %v767 = vunpack.c.l.b16 %v695
      %v768 = vunpack.c.l.b16 %v696
      %v769 = vunpack.c.l.b16 %v697
      %v770 = vunpack.c.l.b16 %v698
      %v771 = vpack.c.b16 %v756, %v755
      %v772 = vpack.c.b16 %v758, %v757
      %v773 = vpack.c.b16 %v760, %v759
      %v774 = vpack.c.b16 %v762, %v761
      %v775 = vpack.c.b16 %v764, %v763
      %v776 = vpack.c.b16 %v766, %v765
      %v777 = vpack.c.b16 %v768, %v767
      %v778 = vpack.c.b16 %v770, %v769
      %v780 = vsel %vm353, %v771, 0
      %v783 = vsel %vm353, %v772, 0
      %v786 = vsel %vm353, %v773, 0
      %v789 = vsel %vm353, %v774, 0
      %v792 = vsel %vm353, %v775, 0
      %v795 = vsel %vm353, %v776, 0
      %v798 = vsel %vm353, %v777, 0
      %v801 = vsel %vm353, %v778, 0
      %803 = vmatpush.bf16.msra.mxu0 0
      %804 = vmatpush.bf16.msra.mxu0 0
      %805 = vmatpush.bf16.msra.mxu0 0
      %806 = vmatpush.bf16.msra.mxu0 0
      %807 = vmatpush.bf16.msra.mxu0 0
      %808 = vmatpush.bf16.msra.mxu0 0
      %809 = vmatpush.bf16.msra.mxu0 0
      %810 = vmatpush.bf16.msra.mxu0 %v240
      %811 = vmatmul.bf16.gmra.mxu0 %v780
      %v812 = vpop.f32.mrf.mxu0
      %v813 = vadd.f32 0.0, %v812
      %v814 = vpop.f32.mrf.mxu0
      %v815 = vadd.f32 0.0, %v814
      %816 = vmatmul.bf16.gmra.mxu0 %v783
      %v817 = vpop.f32.mrf.mxu0
      %v818 = vadd.f32 0.0, %v817
      %v819 = vpop.f32.mrf.mxu0
      %v820 = vadd.f32 0.0, %v819
      %821 = vmatmul.bf16.gmra.mxu0 %v786
      %v822 = vpop.f32.mrf.mxu0
      %v823 = vadd.f32 0.0, %v822
      %v824 = vpop.f32.mrf.mxu0
      %v825 = vadd.f32 0.0, %v824
      %826 = vmatmul.bf16.gmra.mxu0 %v789
      %v827 = vpop.f32.mrf.mxu0
      %v828 = vadd.f32 0.0, %v827
      %v829 = vpop.f32.mrf.mxu0
      %v830 = vadd.f32 0.0, %v829
      %831 = vmatmul.bf16.gmra.mxu0 %v792
      %v832 = vpop.f32.mrf.mxu0
      %v833 = vadd.f32 0.0, %v832
      %v834 = vpop.f32.mrf.mxu0
      %v835 = vadd.f32 0.0, %v834
      %836 = vmatmul.bf16.gmra.mxu0 %v795
      %v837 = vpop.f32.mrf.mxu0
      %v838 = vadd.f32 0.0, %v837
      %v839 = vpop.f32.mrf.mxu0
      %v840 = vadd.f32 0.0, %v839
      %841 = vmatmul.bf16.gmra.mxu0 %v798
      %v842 = vpop.f32.mrf.mxu0
      %v843 = vadd.f32 0.0, %v842
      %v844 = vpop.f32.mrf.mxu0
      %v845 = vadd.f32 0.0, %v844
      %846 = vmatmul.bf16.gmra.mxu0 %v801
      %v847 = vpop.f32.mrf.mxu0
      %v848 = vadd.f32 0.0, %v847
      %v849 = vpop.f32.mrf.mxu0
      %v850 = vadd.f32 0.0, %v849
      %851 = vdwg.mxu0
      %852 = vmatpush.bf16.msra.mxu0 0
      %853 = vmatpush.bf16.msra.mxu0 0
      %854 = vmatpush.bf16.msra.mxu0 0
      %855 = vmatpush.bf16.msra.mxu0 0
      %856 = vmatpush.bf16.msra.mxu0 0
      %857 = vmatpush.bf16.msra.mxu0 0
      %858 = vmatpush.bf16.msra.mxu0 0
      %859 = vmatpush.bf16.msra.mxu0 %v431
      %860 = vmatmul.bf16.gmra.mxu0 %v780
      %v861 = vpop.f32.mrf.mxu0
      %v862 = vadd.f32 %v813, %v861
      %v863 = vpop.f32.mrf.mxu0
      %v864 = vadd.f32 %v815, %v863
      %865 = vmatmul.bf16.gmra.mxu0 %v783
      %v866 = vpop.f32.mrf.mxu0
      %v867 = vadd.f32 %v818, %v866
      %v868 = vpop.f32.mrf.mxu0
      %v869 = vadd.f32 %v820, %v868
      %870 = vmatmul.bf16.gmra.mxu0 %v786
      %v871 = vpop.f32.mrf.mxu0
      %v872 = vadd.f32 %v823, %v871
      %v873 = vpop.f32.mrf.mxu0
      %v874 = vadd.f32 %v825, %v873
      %875 = vmatmul.bf16.gmra.mxu0 %v789
      %v876 = vpop.f32.mrf.mxu0
      %v877 = vadd.f32 %v828, %v876
      %v878 = vpop.f32.mrf.mxu0
      %v879 = vadd.f32 %v830, %v878
      %880 = vmatmul.bf16.gmra.mxu0 %v792
      %v881 = vpop.f32.mrf.mxu0
      %v882 = vadd.f32 %v833, %v881
      %v883 = vpop.f32.mrf.mxu0
      %v884 = vadd.f32 %v835, %v883
      %885 = vmatmul.bf16.gmra.mxu0 %v795
      %v886 = vpop.f32.mrf.mxu0
      %v887 = vadd.f32 %v838, %v886
      %v888 = vpop.f32.mrf.mxu0
      %v889 = vadd.f32 %v840, %v888
      %890 = vmatmul.bf16.gmra.mxu0 %v798
      %v891 = vpop.f32.mrf.mxu0
      %v892 = vadd.f32 %v843, %v891
      %v893 = vpop.f32.mrf.mxu0
      %v894 = vadd.f32 %v845, %v893
      %895 = vmatmul.bf16.gmra.mxu0 %v801
      %v896 = vpop.f32.mrf.mxu0
      %v897 = vadd.f32 %v848, %v896
      %v898 = vpop.f32.mrf.mxu0
      %v899 = vadd.f32 %v850, %v898
      %900 = vdwg.mxu0
      %v902 = vsel %vm353, %v731, 0
      %v905 = vsel %vm353, %v732, 0
      %v908 = vsel %vm353, %v733, 0
      %v911 = vsel %vm353, %v734, 0
      %v914 = vsel %vm353, %v735, 0
      %v917 = vsel %vm353, %v736, 0
      %v920 = vsel %vm353, %v737, 0
      %v923 = vsel %vm353, %v738, 0
      %925 = vmatpush.bf16.msra.mxu0 0
      %926 = vmatpush.bf16.msra.mxu0 0
      %927 = vmatpush.bf16.msra.mxu0 0
      %928 = vmatpush.bf16.msra.mxu0 0
      %929 = vmatpush.bf16.msra.mxu0 0
      %930 = vmatpush.bf16.msra.mxu0 0
      %931 = vmatpush.bf16.msra.mxu0 0
      %932 = vmatpush.bf16.msra.mxu0 %v431
      %933 = vmatmul.bf16.gmra.mxu0 %v902
      %v934 = vpop.f32.mrf.mxu0
      %v935 = vadd.f32 0.0, %v934
      %v936 = vpop.f32.mrf.mxu0
      %v937 = vadd.f32 0.0, %v936
      %938 = vmatmul.bf16.gmra.mxu0 %v905
      %v939 = vpop.f32.mrf.mxu0
      %v940 = vadd.f32 0.0, %v939
      %v941 = vpop.f32.mrf.mxu0
      %v942 = vadd.f32 0.0, %v941
      %943 = vmatmul.bf16.gmra.mxu0 %v908
      %v944 = vpop.f32.mrf.mxu0
      %v945 = vadd.f32 0.0, %v944
      %v946 = vpop.f32.mrf.mxu0
      %v947 = vadd.f32 0.0, %v946
      %948 = vmatmul.bf16.gmra.mxu0 %v911
      %v949 = vpop.f32.mrf.mxu0
      %v950 = vadd.f32 0.0, %v949
      %v951 = vpop.f32.mrf.mxu0
      %v952 = vadd.f32 0.0, %v951
      %953 = vmatmul.bf16.gmra.mxu0 %v914
      %v954 = vpop.f32.mrf.mxu0
      %v955 = vadd.f32 0.0, %v954
      %v956 = vpop.f32.mrf.mxu0
      %v957 = vadd.f32 0.0, %v956
      %958 = vmatmul.bf16.gmra.mxu0 %v917
      %v959 = vpop.f32.mrf.mxu0
      %v960 = vadd.f32 0.0, %v959
      %v961 = vpop.f32.mrf.mxu0
      %v962 = vadd.f32 0.0, %v961
      %963 = vmatmul.bf16.gmra.mxu0 %v920
      %v964 = vpop.f32.mrf.mxu0
      %v965 = vadd.f32 0.0, %v964
      %v966 = vpop.f32.mrf.mxu0
      %v967 = vadd.f32 0.0, %v966
      %968 = vmatmul.bf16.gmra.mxu0 %v923
      %v969 = vpop.f32.mrf.mxu0
      %v970 = vadd.f32 0.0, %v969
      %v971 = vpop.f32.mrf.mxu0
      %v972 = vadd.f32 0.0, %v971
      %973 = vdwg.mxu0
      %v974 = vadd.f32 %v862, %v935
      %v975 = vadd.f32 %v864, %v937
      %v976 = vadd.f32 %v867, %v940
      %v977 = vadd.f32 %v869, %v942
      %v978 = vadd.f32 %v872, %v945
      %v979 = vadd.f32 %v874, %v947
      %v980 = vadd.f32 %v877, %v950
      %v981 = vadd.f32 %v879, %v952
      %v982 = vadd.f32 %v882, %v955
      %v983 = vadd.f32 %v884, %v957
      %v984 = vadd.f32 %v887, %v960
      %v985 = vadd.f32 %v889, %v962
      %v986 = vadd.f32 %v892, %v965
      %v987 = vadd.f32 %v894, %v967
      %v988 = vadd.f32 %v897, %v970
      %v989 = vadd.f32 %v899, %v972
      %v990 = vmul.f32 %v974, %v232
      %v991 = vmul.f32 %v975, %v233
      %v992 = vmul.f32 %v976, %v232
      %v993 = vmul.f32 %v977, %v233
      %v994 = vmul.f32 %v978, %v232
      %v995 = vmul.f32 %v979, %v233
      %v996 = vmul.f32 %v980, %v232
      %v997 = vmul.f32 %v981, %v233
      %v998 = vmul.f32 %v982, %v232
      %v999 = vmul.f32 %v983, %v233
      %v1000 = vmul.f32 %v984, %v232
      %v1001 = vmul.f32 %v985, %v233
      %v1002 = vmul.f32 %v986, %v232
      %v1003 = vmul.f32 %v987, %v233
      %v1004 = vmul.f32 %v988, %v232
      %v1005 = vmul.f32 %v989, %v233
      %v1006 = vadd.f32 %v990, %v991
      %v1007 = vrot.slane %v1006, 4
      %v1008 = vadd.f32 %v1006, %v1007
      %v1009 = vrot.slane %v1008, 2
      %v1010 = vadd.f32 %v1008, %v1009
      %v1011 = vrot.slane %v1010, 1
      %v1012 = vadd.f32 %v1010, %v1011
      %v1013 = vadd.f32 %v992, %v993
      %v1014 = vrot.slane %v1013, 4
      %v1015 = vadd.f32 %v1013, %v1014
      %v1016 = vrot.slane %v1015, 2
      %v1017 = vadd.f32 %v1015, %v1016
      %v1018 = vrot.slane %v1017, 1
      %v1019 = vadd.f32 %v1017, %v1018
      %v1020 = vadd.f32 %v994, %v995
      %v1021 = vrot.slane %v1020, 4
      %v1022 = vadd.f32 %v1020, %v1021
      %v1023 = vrot.slane %v1022, 2
      %v1024 = vadd.f32 %v1022, %v1023
      %v1025 = vrot.slane %v1024, 1
      %v1026 = vadd.f32 %v1024, %v1025
      %v1027 = vadd.f32 %v996, %v997
      %v1028 = vrot.slane %v1027, 4
      %v1029 = vadd.f32 %v1027, %v1028
      %v1030 = vrot.slane %v1029, 2
      %v1031 = vadd.f32 %v1029, %v1030
      %v1032 = vrot.slane %v1031, 1
      %v1033 = vadd.f32 %v1031, %v1032
      %v1034 = vadd.f32 %v998, %v999
      %v1035 = vrot.slane %v1034, 4
      %v1036 = vadd.f32 %v1034, %v1035
      %v1037 = vrot.slane %v1036, 2
      %v1038 = vadd.f32 %v1036, %v1037
      %v1039 = vrot.slane %v1038, 1
      %v1040 = vadd.f32 %v1038, %v1039
      %v1041 = vadd.f32 %v1000, %v1001
      %v1042 = vrot.slane %v1041, 4
      %v1043 = vadd.f32 %v1041, %v1042
      %v1044 = vrot.slane %v1043, 2
      %v1045 = vadd.f32 %v1043, %v1044
      %v1046 = vrot.slane %v1045, 1
      %v1047 = vadd.f32 %v1045, %v1046
      %v1048 = vadd.f32 %v1002, %v1003
      %v1049 = vrot.slane %v1048, 4
      %v1050 = vadd.f32 %v1048, %v1049
      %v1051 = vrot.slane %v1050, 2
      %v1052 = vadd.f32 %v1050, %v1051
      %v1053 = vrot.slane %v1052, 1
      %v1054 = vadd.f32 %v1052, %v1053
      %v1055 = vadd.f32 %v1004, %v1005
      %v1056 = vrot.slane %v1055, 4
      %v1057 = vadd.f32 %v1055, %v1056
      %v1058 = vrot.slane %v1057, 2
      %v1059 = vadd.f32 %v1057, %v1058
      %v1060 = vrot.slane %v1059, 1
      %v1061 = vadd.f32 %v1059, %v1060
      %v1070 = vsel %vm651, %v1019, %v1012
      %v1071 = vsel %vm653, %v1026, %v1070
      %v1072 = vsel %vm655, %v1033, %v1071
      %v1073 = vsel %vm657, %v1040, %v1072
      %v1074 = vsel %vm659, %v1047, %v1073
      %v1075 = vsel %vm661, %v1054, %v1074
      %v1076 = vsel %vm663, %v1061, %v1075
      %1078 = vst [vmem:[%s191 + $0x8] sm:$0xff] %v1076
      %v1079 = vld [vmem:[%s183 + $0x100] sm:$0xff]
      %v1080 = vld [vmem:[%s183 + $0x108] sm:$0xff]
      %v1081 = vld [vmem:[%s183 + $0x110] sm:$0xff]
      %v1082 = vld [vmem:[%s183 + $0x118] sm:$0xff]
      %v1083 = vld [vmem:[%s183 + $0x120] sm:$0xff]
      %v1084 = vld [vmem:[%s183 + $0x128] sm:$0xff]
      %v1085 = vld [vmem:[%s183 + $0x130] sm:$0xff]
      %v1086 = vld [vmem:[%s183 + $0x138] sm:$0xff]
      %v1087 = vld [vmem:[%s183 + $0x140] sm:$0xff]
      %v1088 = vld [vmem:[%s183 + $0x148] sm:$0xff]
      %v1089 = vld [vmem:[%s183 + $0x150] sm:$0xff]
      %v1090 = vld [vmem:[%s183 + $0x158] sm:$0xff]
      %v1091 = vld [vmem:[%s183 + $0x160] sm:$0xff]
      %v1092 = vld [vmem:[%s183 + $0x168] sm:$0xff]
      %v1093 = vld [vmem:[%s183 + $0x170] sm:$0xff]
      %v1094 = vld [vmem:[%s183 + $0x178] sm:$0xff]
      %v1095 = vpack.c.bf16 %v1079, %v1079
      %v1096 = vpack.c.bf16 %v1080, %v1080
      %v1097 = vpack.c.bf16 %v1081, %v1081
      %v1098 = vpack.c.bf16 %v1082, %v1082
      %v1099 = vpack.c.bf16 %v1083, %v1083
      %v1100 = vpack.c.bf16 %v1084, %v1084
      %v1101 = vpack.c.bf16 %v1085, %v1085
      %v1102 = vpack.c.bf16 %v1086, %v1086
      %v1103 = vpack.c.bf16 %v1087, %v1087
      %v1104 = vpack.c.bf16 %v1088, %v1088
      %v1105 = vpack.c.bf16 %v1089, %v1089
      %v1106 = vpack.c.bf16 %v1090, %v1090
      %v1107 = vpack.c.bf16 %v1091, %v1091
      %v1108 = vpack.c.bf16 %v1092, %v1092
      %v1109 = vpack.c.bf16 %v1093, %v1093
      %v1110 = vpack.c.bf16 %v1094, %v1094
      %v1111 = vunpack.c.l.bf16 %v1095
      %v1112 = vunpack.c.l.bf16 %v1096
      %v1113 = vunpack.c.l.bf16 %v1097
      %v1114 = vunpack.c.l.bf16 %v1098
      %v1115 = vunpack.c.l.bf16 %v1099
      %v1116 = vunpack.c.l.bf16 %v1100
      %v1117 = vunpack.c.l.bf16 %v1101
      %v1118 = vunpack.c.l.bf16 %v1102
      %v1119 = vunpack.c.l.bf16 %v1103
      %v1120 = vunpack.c.l.bf16 %v1104
      %v1121 = vunpack.c.l.bf16 %v1105
      %v1122 = vunpack.c.l.bf16 %v1106
      %v1123 = vunpack.c.l.bf16 %v1107
      %v1124 = vunpack.c.l.bf16 %v1108
      %v1125 = vunpack.c.l.bf16 %v1109
      %v1126 = vunpack.c.l.bf16 %v1110
      %v1127 = vsub.f32 %v1079, %v1111
      %v1128 = vsub.f32 %v1080, %v1112
      %v1129 = vsub.f32 %v1081, %v1113
      %v1130 = vsub.f32 %v1082, %v1114
      %v1131 = vsub.f32 %v1083, %v1115
      %v1132 = vsub.f32 %v1084, %v1116
      %v1133 = vsub.f32 %v1085, %v1117
      %v1134 = vsub.f32 %v1086, %v1118
      %v1135 = vsub.f32 %v1087, %v1119
      %v1136 = vsub.f32 %v1088, %v1120
      %v1137 = vsub.f32 %v1089, %v1121
      %v1138 = vsub.f32 %v1090, %v1122
      %v1139 = vsub.f32 %v1091, %v1123
      %v1140 = vsub.f32 %v1092, %v1124
      %v1141 = vsub.f32 %v1093, %v1125
      %v1142 = vsub.f32 %v1094, %v1126
      %v1143 = vpack.c.bf16 %v1128, %v1127
      %v1144 = vpack.c.bf16 %v1130, %v1129
      %v1145 = vpack.c.bf16 %v1132, %v1131
      %v1146 = vpack.c.bf16 %v1134, %v1133
      %v1147 = vpack.c.bf16 %v1136, %v1135
      %v1148 = vpack.c.bf16 %v1138, %v1137
      %v1149 = vpack.c.bf16 %v1140, %v1139
      %v1150 = vpack.c.bf16 %v1142, %v1141
      %v1167 = vunpack.c.l.b16 %v1095
      %v1168 = vunpack.c.l.b16 %v1096
      %v1169 = vunpack.c.l.b16 %v1097
      %v1170 = vunpack.c.l.b16 %v1098
      %v1171 = vunpack.c.l.b16 %v1099
      %v1172 = vunpack.c.l.b16 %v1100
      %v1173 = vunpack.c.l.b16 %v1101
      %v1174 = vunpack.c.l.b16 %v1102
      %v1175 = vunpack.c.l.b16 %v1103
      %v1176 = vunpack.c.l.b16 %v1104
      %v1177 = vunpack.c.l.b16 %v1105
      %v1178 = vunpack.c.l.b16 %v1106
      %v1179 = vunpack.c.l.b16 %v1107
      %v1180 = vunpack.c.l.b16 %v1108
      %v1181 = vunpack.c.l.b16 %v1109
      %v1182 = vunpack.c.l.b16 %v1110
      %v1183 = vpack.c.b16 %v1168, %v1167
      %v1184 = vpack.c.b16 %v1170, %v1169
      %v1185 = vpack.c.b16 %v1172, %v1171
      %v1186 = vpack.c.b16 %v1174, %v1173
      %v1187 = vpack.c.b16 %v1176, %v1175
      %v1188 = vpack.c.b16 %v1178, %v1177
      %v1189 = vpack.c.b16 %v1180, %v1179
      %v1190 = vpack.c.b16 %v1182, %v1181
      %v1192 = vsel %vm353, %v1183, 0
      %v1195 = vsel %vm353, %v1184, 0
      %v1198 = vsel %vm353, %v1185, 0
      %v1201 = vsel %vm353, %v1186, 0
      %v1204 = vsel %vm353, %v1187, 0
      %v1207 = vsel %vm353, %v1188, 0
      %v1210 = vsel %vm353, %v1189, 0
      %v1213 = vsel %vm353, %v1190, 0
      %1215 = vmatpush.bf16.msra.mxu0 0
      %1216 = vmatpush.bf16.msra.mxu0 0
      %1217 = vmatpush.bf16.msra.mxu0 0
      %1218 = vmatpush.bf16.msra.mxu0 0
      %1219 = vmatpush.bf16.msra.mxu0 0
      %1220 = vmatpush.bf16.msra.mxu0 0
      %1221 = vmatpush.bf16.msra.mxu0 0
      %1222 = vmatpush.bf16.msra.mxu0 %v240
      %1223 = vmatmul.bf16.gmra.mxu0 %v1192
      %v1224 = vpop.f32.mrf.mxu0
      %v1225 = vadd.f32 0.0, %v1224
      %v1226 = vpop.f32.mrf.mxu0
      %v1227 = vadd.f32 0.0, %v1226
      %1228 = vmatmul.bf16.gmra.mxu0 %v1195
      %v1229 = vpop.f32.mrf.mxu0
      %v1230 = vadd.f32 0.0, %v1229
      %v1231 = vpop.f32.mrf.mxu0
      %v1232 = vadd.f32 0.0, %v1231
      %1233 = vmatmul.bf16.gmra.mxu0 %v1198
      %v1234 = vpop.f32.mrf.mxu0
      %v1235 = vadd.f32 0.0, %v1234
      %v1236 = vpop.f32.mrf.mxu0
      %v1237 = vadd.f32 0.0, %v1236
      %1238 = vmatmul.bf16.gmra.mxu0 %v1201
      %v1239 = vpop.f32.mrf.mxu0
      %v1240 = vadd.f32 0.0, %v1239
      %v1241 = vpop.f32.mrf.mxu0
      %v1242 = vadd.f32 0.0, %v1241
      %1243 = vmatmul.bf16.gmra.mxu0 %v1204
      %v1244 = vpop.f32.mrf.mxu0
      %v1245 = vadd.f32 0.0, %v1244
      %v1246 = vpop.f32.mrf.mxu0
      %v1247 = vadd.f32 0.0, %v1246
      %1248 = vmatmul.bf16.gmra.mxu0 %v1207
      %v1249 = vpop.f32.mrf.mxu0
      %v1250 = vadd.f32 0.0, %v1249
      %v1251 = vpop.f32.mrf.mxu0
      %v1252 = vadd.f32 0.0, %v1251
      %1253 = vmatmul.bf16.gmra.mxu0 %v1210
      %v1254 = vpop.f32.mrf.mxu0
      %v1255 = vadd.f32 0.0, %v1254
      %v1256 = vpop.f32.mrf.mxu0
      %v1257 = vadd.f32 0.0, %v1256
      %1258 = vmatmul.bf16.gmra.mxu0 %v1213
      %v1259 = vpop.f32.mrf.mxu0
      %v1260 = vadd.f32 0.0, %v1259
      %v1261 = vpop.f32.mrf.mxu0
      %v1262 = vadd.f32 0.0, %v1261
      %1263 = vdwg.mxu0
      %1264 = vmatpush.bf16.msra.mxu0 0
      %1265 = vmatpush.bf16.msra.mxu0 0
      %1266 = vmatpush.bf16.msra.mxu0 0
      %1267 = vmatpush.bf16.msra.mxu0 0
      %1268 = vmatpush.bf16.msra.mxu0 0
      %1269 = vmatpush.bf16.msra.mxu0 0
      %1270 = vmatpush.bf16.msra.mxu0 0
      %1271 = vmatpush.bf16.msra.mxu0 %v431
      %1272 = vmatmul.bf16.gmra.mxu0 %v1192
      %v1273 = vpop.f32.mrf.mxu0
      %v1274 = vadd.f32 %v1225, %v1273
      %v1275 = vpop.f32.mrf.mxu0
      %v1276 = vadd.f32 %v1227, %v1275
      %1277 = vmatmul.bf16.gmra.mxu0 %v1195
      %v1278 = vpop.f32.mrf.mxu0
      %v1279 = vadd.f32 %v1230, %v1278
      %v1280 = vpop.f32.mrf.mxu0
      %v1281 = vadd.f32 %v1232, %v1280
      %1282 = vmatmul.bf16.gmra.mxu0 %v1198
      %v1283 = vpop.f32.mrf.mxu0
      %v1284 = vadd.f32 %v1235, %v1283
      %v1285 = vpop.f32.mrf.mxu0
      %v1286 = vadd.f32 %v1237, %v1285
      %1287 = vmatmul.bf16.gmra.mxu0 %v1201
      %v1288 = vpop.f32.mrf.mxu0
      %v1289 = vadd.f32 %v1240, %v1288
      %v1290 = vpop.f32.mrf.mxu0
      %v1291 = vadd.f32 %v1242, %v1290
      %1292 = vmatmul.bf16.gmra.mxu0 %v1204
      %v1293 = vpop.f32.mrf.mxu0
      %v1294 = vadd.f32 %v1245, %v1293
      %v1295 = vpop.f32.mrf.mxu0
      %v1296 = vadd.f32 %v1247, %v1295
      %1297 = vmatmul.bf16.gmra.mxu0 %v1207
      %v1298 = vpop.f32.mrf.mxu0
      %v1299 = vadd.f32 %v1250, %v1298
      %v1300 = vpop.f32.mrf.mxu0
      %v1301 = vadd.f32 %v1252, %v1300
      %1302 = vmatmul.bf16.gmra.mxu0 %v1210
      %v1303 = vpop.f32.mrf.mxu0
      %v1304 = vadd.f32 %v1255, %v1303
      %v1305 = vpop.f32.mrf.mxu0
      %v1306 = vadd.f32 %v1257, %v1305
      %1307 = vmatmul.bf16.gmra.mxu0 %v1213
      %v1308 = vpop.f32.mrf.mxu0
      %v1309 = vadd.f32 %v1260, %v1308
      %v1310 = vpop.f32.mrf.mxu0
      %v1311 = vadd.f32 %v1262, %v1310
      %1312 = vdwg.mxu0
      %v1314 = vsel %vm353, %v1143, 0
      %v1317 = vsel %vm353, %v1144, 0
      %v1320 = vsel %vm353, %v1145, 0
      %v1323 = vsel %vm353, %v1146, 0
      %v1326 = vsel %vm353, %v1147, 0
      %v1329 = vsel %vm353, %v1148, 0
      %v1332 = vsel %vm353, %v1149, 0
      %v1335 = vsel %vm353, %v1150, 0
      %1337 = vmatpush.bf16.msra.mxu0 0
      %1338 = vmatpush.bf16.msra.mxu0 0
      %1339 = vmatpush.bf16.msra.mxu0 0
      %1340 = vmatpush.bf16.msra.mxu0 0
      %1341 = vmatpush.bf16.msra.mxu0 0
      %1342 = vmatpush.bf16.msra.mxu0 0
      %1343 = vmatpush.bf16.msra.mxu0 0
      %1344 = vmatpush.bf16.msra.mxu0 %v431
      %1345 = vmatmul.bf16.gmra.mxu0 %v1314
      %v1346 = vpop.f32.mrf.mxu0
      %v1347 = vadd.f32 0.0, %v1346
      %v1348 = vpop.f32.mrf.mxu0
      %v1349 = vadd.f32 0.0, %v1348
      %1350 = vmatmul.bf16.gmra.mxu0 %v1317
      %v1351 = vpop.f32.mrf.mxu0
      %v1352 = vadd.f32 0.0, %v1351
      %v1353 = vpop.f32.mrf.mxu0
      %v1354 = vadd.f32 0.0, %v1353
      %1355 = vmatmul.bf16.gmra.mxu0 %v1320
      %v1356 = vpop.f32.mrf.mxu0
      %v1357 = vadd.f32 0.0, %v1356
      %v1358 = vpop.f32.mrf.mxu0
      %v1359 = vadd.f32 0.0, %v1358
      %1360 = vmatmul.bf16.gmra.mxu0 %v1323
      %v1361 = vpop.f32.mrf.mxu0
      %v1362 = vadd.f32 0.0, %v1361
      %v1363 = vpop.f32.mrf.mxu0
      %v1364 = vadd.f32 0.0, %v1363
      %1365 = vmatmul.bf16.gmra.mxu0 %v1326
      %v1366 = vpop.f32.mrf.mxu0
      %v1367 = vadd.f32 0.0, %v1366
      %v1368 = vpop.f32.mrf.mxu0
      %v1369 = vadd.f32 0.0, %v1368
      %1370 = vmatmul.bf16.gmra.mxu0 %v1329
      %v1371 = vpop.f32.mrf.mxu0
      %v1372 = vadd.f32 0.0, %v1371
      %v1373 = vpop.f32.mrf.mxu0
      %v1374 = vadd.f32 0.0, %v1373
      %1375 = vmatmul.bf16.gmra.mxu0 %v1332
      %v1376 = vpop.f32.mrf.mxu0
      %v1377 = vadd.f32 0.0, %v1376
      %v1378 = vpop.f32.mrf.mxu0
      %v1379 = vadd.f32 0.0, %v1378
      %1380 = vmatmul.bf16.gmra.mxu0 %v1335
      %v1381 = vpop.f32.mrf.mxu0
      %v1382 = vadd.f32 0.0, %v1381
      %v1383 = vpop.f32.mrf.mxu0
      %v1384 = vadd.f32 0.0, %v1383
      %1385 = vdwg.mxu0
      %v1386 = vadd.f32 %v1274, %v1347
      %v1387 = vadd.f32 %v1276, %v1349
      %v1388 = vadd.f32 %v1279, %v1352
      %v1389 = vadd.f32 %v1281, %v1354
      %v1390 = vadd.f32 %v1284, %v1357
      %v1391 = vadd.f32 %v1286, %v1359
      %v1392 = vadd.f32 %v1289, %v1362
      %v1393 = vadd.f32 %v1291, %v1364
      %v1394 = vadd.f32 %v1294, %v1367
      %v1395 = vadd.f32 %v1296, %v1369
      %v1396 = vadd.f32 %v1299, %v1372
      %v1397 = vadd.f32 %v1301, %v1374
      %v1398 = vadd.f32 %v1304, %v1377
      %v1399 = vadd.f32 %v1306, %v1379
      %v1400 = vadd.f32 %v1309, %v1382
      %v1401 = vadd.f32 %v1311, %v1384
      %v1402 = vmul.f32 %v1386, %v232
      %v1403 = vmul.f32 %v1387, %v233
      %v1404 = vmul.f32 %v1388, %v232
      %v1405 = vmul.f32 %v1389, %v233
      %v1406 = vmul.f32 %v1390, %v232
      %v1407 = vmul.f32 %v1391, %v233
      %v1408 = vmul.f32 %v1392, %v232
      %v1409 = vmul.f32 %v1393, %v233
      %v1410 = vmul.f32 %v1394, %v232
      %v1411 = vmul.f32 %v1395, %v233
      %v1412 = vmul.f32 %v1396, %v232
      %v1413 = vmul.f32 %v1397, %v233
      %v1414 = vmul.f32 %v1398, %v232
      %v1415 = vmul.f32 %v1399, %v233
      %v1416 = vmul.f32 %v1400, %v232
      %v1417 = vmul.f32 %v1401, %v233
      %v1418 = vadd.f32 %v1402, %v1403
      %v1419 = vrot.slane %v1418, 4
      %v1420 = vadd.f32 %v1418, %v1419
      %v1421 = vrot.slane %v1420, 2
      %v1422 = vadd.f32 %v1420, %v1421
      %v1423 = vrot.slane %v1422, 1
      %v1424 = vadd.f32 %v1422, %v1423
      %v1425 = vadd.f32 %v1404, %v1405
      %v1426 = vrot.slane %v1425, 4
      %v1427 = vadd.f32 %v1425, %v1426
      %v1428 = vrot.slane %v1427, 2
      %v1429 = vadd.f32 %v1427, %v1428
      %v1430 = vrot.slane %v1429, 1
      %v1431 = vadd.f32 %v1429, %v1430
      %v1432 = vadd.f32 %v1406, %v1407
      %v1433 = vrot.slane %v1432, 4
      %v1434 = vadd.f32 %v1432, %v1433
      %v1435 = vrot.slane %v1434, 2
      %v1436 = vadd.f32 %v1434, %v1435
      %v1437 = vrot.slane %v1436, 1
      %v1438 = vadd.f32 %v1436, %v1437
      %v1439 = vadd.f32 %v1408, %v1409
      %v1440 = vrot.slane %v1439, 4
      %v1441 = vadd.f32 %v1439, %v1440
      %v1442 = vrot.slane %v1441, 2
      %v1443 = vadd.f32 %v1441, %v1442
      %v1444 = vrot.slane %v1443, 1
      %v1445 = vadd.f32 %v1443, %v1444
      %v1446 = vadd.f32 %v1410, %v1411
      %v1447 = vrot.slane %v1446, 4
      %v1448 = vadd.f32 %v1446, %v1447
      %v1449 = vrot.slane %v1448, 2
      %v1450 = vadd.f32 %v1448, %v1449
      %v1451 = vrot.slane %v1450, 1
      %v1452 = vadd.f32 %v1450, %v1451
      %v1453 = vadd.f32 %v1412, %v1413
      %v1454 = vrot.slane %v1453, 4
      %v1455 = vadd.f32 %v1453, %v1454
      %v1456 = vrot.slane %v1455, 2
      %v1457 = vadd.f32 %v1455, %v1456
      %v1458 = vrot.slane %v1457, 1
      %v1459 = vadd.f32 %v1457, %v1458
      %v1460 = vadd.f32 %v1414, %v1415
      %v1461 = vrot.slane %v1460, 4
      %v1462 = vadd.f32 %v1460, %v1461
      %v1463 = vrot.slane %v1462, 2
      %v1464 = vadd.f32 %v1462, %v1463
      %v1465 = vrot.slane %v1464, 1
      %v1466 = vadd.f32 %v1464, %v1465
      %v1467 = vadd.f32 %v1416, %v1417
      %v1468 = vrot.slane %v1467, 4
      %v1469 = vadd.f32 %v1467, %v1468
      %v1470 = vrot.slane %v1469, 2
      %v1471 = vadd.f32 %v1469, %v1470
      %v1472 = vrot.slane %v1471, 1
      %v1473 = vadd.f32 %v1471, %v1472
      %v1482 = vsel %vm651, %v1431, %v1424
      %v1483 = vsel %vm653, %v1438, %v1482
      %v1484 = vsel %vm655, %v1445, %v1483
      %v1485 = vsel %vm657, %v1452, %v1484
      %v1486 = vsel %vm659, %v1459, %v1485
      %v1487 = vsel %vm661, %v1466, %v1486
      %v1488 = vsel %vm663, %v1473, %v1487
      %1490 = vst [vmem:[%s191 + $0x10] sm:$0xff] %v1488
      %v1491 = vld [vmem:[%s183 + $0x180] sm:$0xff]
      %v1492 = vld [vmem:[%s183 + $0x188] sm:$0xff]
      %v1493 = vld [vmem:[%s183 + $0x190] sm:$0xff]
      %v1494 = vld [vmem:[%s183 + $0x198] sm:$0xff]
      %v1495 = vld [vmem:[%s183 + $0x1a0] sm:$0xff]
      %v1496 = vld [vmem:[%s183 + $0x1a8] sm:$0xff]
      %v1497 = vld [vmem:[%s183 + $0x1b0] sm:$0xff]
      %v1498 = vld [vmem:[%s183 + $0x1b8] sm:$0xff]
      %v1499 = vld [vmem:[%s183 + $0x1c0] sm:$0xff]
      %v1500 = vld [vmem:[%s183 + $0x1c8] sm:$0xff]
      %v1501 = vld [vmem:[%s183 + $0x1d0] sm:$0xff]
      %v1502 = vld [vmem:[%s183 + $0x1d8] sm:$0xff]
      %v1503 = vld [vmem:[%s183 + $0x1e0] sm:$0xff]
      %v1504 = vld [vmem:[%s183 + $0x1e8] sm:$0xff]
      %v1505 = vld [vmem:[%s183 + $0x1f0] sm:$0xff]
      %v1506 = vld [vmem:[%s183 + $0x1f8] sm:$0xff]
      %v1507 = vpack.c.bf16 %v1491, %v1491
      %v1508 = vpack.c.bf16 %v1492, %v1492
      %v1509 = vpack.c.bf16 %v1493, %v1493
      %v1510 = vpack.c.bf16 %v1494, %v1494
      %v1511 = vpack.c.bf16 %v1495, %v1495
      %v1512 = vpack.c.bf16 %v1496, %v1496
      %v1513 = vpack.c.bf16 %v1497, %v1497
      %v1514 = vpack.c.bf16 %v1498, %v1498
      %v1515 = vpack.c.bf16 %v1499, %v1499
      %v1516 = vpack.c.bf16 %v1500, %v1500
      %v1517 = vpack.c.bf16 %v1501, %v1501
      %v1518 = vpack.c.bf16 %v1502, %v1502
      %v1519 = vpack.c.bf16 %v1503, %v1503
      %v1520 = vpack.c.bf16 %v1504, %v1504
      %v1521 = vpack.c.bf16 %v1505, %v1505
      %v1522 = vpack.c.bf16 %v1506, %v1506
      %v1523 = vunpack.c.l.bf16 %v1507
      %v1524 = vunpack.c.l.bf16 %v1508
      %v1525 = vunpack.c.l.bf16 %v1509
      %v1526 = vunpack.c.l.bf16 %v1510
      %v1527 = vunpack.c.l.bf16 %v1511
      %v1528 = vunpack.c.l.bf16 %v1512
      %v1529 = vunpack.c.l.bf16 %v1513
      %v1530 = vunpack.c.l.bf16 %v1514
      %v1531 = vunpack.c.l.bf16 %v1515
      %v1532 = vunpack.c.l.bf16 %v1516
      %v1533 = vunpack.c.l.bf16 %v1517
      %v1534 = vunpack.c.l.bf16 %v1518
      %v1535 = vunpack.c.l.bf16 %v1519
      %v1536 = vunpack.c.l.bf16 %v1520
      %v1537 = vunpack.c.l.bf16 %v1521
      %v1538 = vunpack.c.l.bf16 %v1522
      %v1539 = vsub.f32 %v1491, %v1523
      %v1540 = vsub.f32 %v1492, %v1524
      %v1541 = vsub.f32 %v1493, %v1525
      %v1542 = vsub.f32 %v1494, %v1526
      %v1543 = vsub.f32 %v1495, %v1527
      %v1544 = vsub.f32 %v1496, %v1528
      %v1545 = vsub.f32 %v1497, %v1529
      %v1546 = vsub.f32 %v1498, %v1530
      %v1547 = vsub.f32 %v1499, %v1531
      %v1548 = vsub.f32 %v1500, %v1532
      %v1549 = vsub.f32 %v1501, %v1533
      %v1550 = vsub.f32 %v1502, %v1534
      %v1551 = vsub.f32 %v1503, %v1535
      %v1552 = vsub.f32 %v1504, %v1536
      %v1553 = vsub.f32 %v1505, %v1537
      %v1554 = vsub.f32 %v1506, %v1538
      %v1555 = vpack.c.bf16 %v1540, %v1539
      %v1556 = vpack.c.bf16 %v1542, %v1541
      %v1557 = vpack.c.bf16 %v1544, %v1543
      %v1558 = vpack.c.bf16 %v1546, %v1545
      %v1559 = vpack.c.bf16 %v1548, %v1547
      %v1560 = vpack.c.bf16 %v1550, %v1549
      %v1561 = vpack.c.bf16 %v1552, %v1551
      %v1562 = vpack.c.bf16 %v1554, %v1553
      %v1579 = vunpack.c.l.b16 %v1507
      %v1580 = vunpack.c.l.b16 %v1508
      %v1581 = vunpack.c.l.b16 %v1509
      %v1582 = vunpack.c.l.b16 %v1510
      %v1583 = vunpack.c.l.b16 %v1511
      %v1584 = vunpack.c.l.b16 %v1512
      %v1585 = vunpack.c.l.b16 %v1513
      %v1586 = vunpack.c.l.b16 %v1514
      %v1587 = vunpack.c.l.b16 %v1515
      %v1588 = vunpack.c.l.b16 %v1516
      %v1589 = vunpack.c.l.b16 %v1517
      %v1590 = vunpack.c.l.b16 %v1518
      %v1591 = vunpack.c.l.b16 %v1519
      %v1592 = vunpack.c.l.b16 %v1520
      %v1593 = vunpack.c.l.b16 %v1521
      %v1594 = vunpack.c.l.b16 %v1522
      %v1595 = vpack.c.b16 %v1580, %v1579
      %v1596 = vpack.c.b16 %v1582, %v1581
      %v1597 = vpack.c.b16 %v1584, %v1583
      %v1598 = vpack.c.b16 %v1586, %v1585
      %v1599 = vpack.c.b16 %v1588, %v1587
      %v1600 = vpack.c.b16 %v1590, %v1589
      %v1601 = vpack.c.b16 %v1592, %v1591
      %v1602 = vpack.c.b16 %v1594, %v1593
      %v1604 = vsel %vm353, %v1595, 0
      %v1607 = vsel %vm353, %v1596, 0
      %v1610 = vsel %vm353, %v1597, 0
      %v1613 = vsel %vm353, %v1598, 0
      %v1616 = vsel %vm353, %v1599, 0
      %v1619 = vsel %vm353, %v1600, 0
      %v1622 = vsel %vm353, %v1601, 0
      %v1625 = vsel %vm353, %v1602, 0
      %1627 = vmatpush.bf16.msra.mxu0 0
      %1628 = vmatpush.bf16.msra.mxu0 0
      %1629 = vmatpush.bf16.msra.mxu0 0
      %1630 = vmatpush.bf16.msra.mxu0 0
      %1631 = vmatpush.bf16.msra.mxu0 0
      %1632 = vmatpush.bf16.msra.mxu0 0
      %1633 = vmatpush.bf16.msra.mxu0 0
      %1634 = vmatpush.bf16.msra.mxu0 %v240
      %1635 = vmatmul.bf16.gmra.mxu0 %v1604
      %v1636 = vpop.f32.mrf.mxu0
      %v1637 = vadd.f32 0.0, %v1636
      %v1638 = vpop.f32.mrf.mxu0
      %v1639 = vadd.f32 0.0, %v1638
      %1640 = vmatmul.bf16.gmra.mxu0 %v1607
      %v1641 = vpop.f32.mrf.mxu0
      %v1642 = vadd.f32 0.0, %v1641
      %v1643 = vpop.f32.mrf.mxu0
      %v1644 = vadd.f32 0.0, %v1643
      %1645 = vmatmul.bf16.gmra.mxu0 %v1610
      %v1646 = vpop.f32.mrf.mxu0
      %v1647 = vadd.f32 0.0, %v1646
      %v1648 = vpop.f32.mrf.mxu0
      %v1649 = vadd.f32 0.0, %v1648
      %1650 = vmatmul.bf16.gmra.mxu0 %v1613
      %v1651 = vpop.f32.mrf.mxu0
      %v1652 = vadd.f32 0.0, %v1651
      %v1653 = vpop.f32.mrf.mxu0
      %v1654 = vadd.f32 0.0, %v1653
      %1655 = vmatmul.bf16.gmra.mxu0 %v1616
      %v1656 = vpop.f32.mrf.mxu0
      %v1657 = vadd.f32 0.0, %v1656
      %v1658 = vpop.f32.mrf.mxu0
      %v1659 = vadd.f32 0.0, %v1658
      %1660 = vmatmul.bf16.gmra.mxu0 %v1619
      %v1661 = vpop.f32.mrf.mxu0
      %v1662 = vadd.f32 0.0, %v1661
      %v1663 = vpop.f32.mrf.mxu0
      %v1664 = vadd.f32 0.0, %v1663
      %1665 = vmatmul.bf16.gmra.mxu0 %v1622
      %v1666 = vpop.f32.mrf.mxu0
      %v1667 = vadd.f32 0.0, %v1666
      %v1668 = vpop.f32.mrf.mxu0
      %v1669 = vadd.f32 0.0, %v1668
      %1670 = vmatmul.bf16.gmra.mxu0 %v1625
      %v1671 = vpop.f32.mrf.mxu0
      %v1672 = vadd.f32 0.0, %v1671
      %v1673 = vpop.f32.mrf.mxu0
      %v1674 = vadd.f32 0.0, %v1673
      %1675 = vdwg.mxu0
      %1676 = vmatpush.bf16.msra.mxu0 0
      %1677 = vmatpush.bf16.msra.mxu0 0
      %1678 = vmatpush.bf16.msra.mxu0 0
      %1679 = vmatpush.bf16.msra.mxu0 0
      %1680 = vmatpush.bf16.msra.mxu0 0
      %1681 = vmatpush.bf16.msra.mxu0 0
      %1682 = vmatpush.bf16.msra.mxu0 0
      %1683 = vmatpush.bf16.msra.mxu0 %v431
      %1684 = vmatmul.bf16.gmra.mxu0 %v1604
      %v1685 = vpop.f32.mrf.mxu0
      %v1686 = vadd.f32 %v1637, %v1685
      %v1687 = vpop.f32.mrf.mxu0
      %v1688 = vadd.f32 %v1639, %v1687
      %1689 = vmatmul.bf16.gmra.mxu0 %v1607
      %v1690 = vpop.f32.mrf.mxu0
      %v1691 = vadd.f32 %v1642, %v1690
      %v1692 = vpop.f32.mrf.mxu0
      %v1693 = vadd.f32 %v1644, %v1692
      %1694 = vmatmul.bf16.gmra.mxu0 %v1610
      %v1695 = vpop.f32.mrf.mxu0
      %v1696 = vadd.f32 %v1647, %v1695
      %v1697 = vpop.f32.mrf.mxu0
      %v1698 = vadd.f32 %v1649, %v1697
      %1699 = vmatmul.bf16.gmra.mxu0 %v1613
      %v1700 = vpop.f32.mrf.mxu0
      %v1701 = vadd.f32 %v1652, %v1700
      %v1702 = vpop.f32.mrf.mxu0
      %v1703 = vadd.f32 %v1654, %v1702
      %1704 = vmatmul.bf16.gmra.mxu0 %v1616
      %v1705 = vpop.f32.mrf.mxu0
      %v1706 = vadd.f32 %v1657, %v1705
      %v1707 = vpop.f32.mrf.mxu0
      %v1708 = vadd.f32 %v1659, %v1707
      %1709 = vmatmul.bf16.gmra.mxu0 %v1619
      %v1710 = vpop.f32.mrf.mxu0
      %v1711 = vadd.f32 %v1662, %v1710
      %v1712 = vpop.f32.mrf.mxu0
      %v1713 = vadd.f32 %v1664, %v1712
      %1714 = vmatmul.bf16.gmra.mxu0 %v1622
      %v1715 = vpop.f32.mrf.mxu0
      %v1716 = vadd.f32 %v1667, %v1715
      %v1717 = vpop.f32.mrf.mxu0
      %v1718 = vadd.f32 %v1669, %v1717
      %1719 = vmatmul.bf16.gmra.mxu0 %v1625
      %v1720 = vpop.f32.mrf.mxu0
      %v1721 = vadd.f32 %v1672, %v1720
      %v1722 = vpop.f32.mrf.mxu0
      %v1723 = vadd.f32 %v1674, %v1722
      %1724 = vdwg.mxu0
      %v1726 = vsel %vm353, %v1555, 0
      %v1729 = vsel %vm353, %v1556, 0
      %v1732 = vsel %vm353, %v1557, 0
      %v1735 = vsel %vm353, %v1558, 0
      %v1738 = vsel %vm353, %v1559, 0
      %v1741 = vsel %vm353, %v1560, 0
      %v1744 = vsel %vm353, %v1561, 0
      %v1747 = vsel %vm353, %v1562, 0
      %1749 = vmatpush.bf16.msra.mxu0 0
      %1750 = vmatpush.bf16.msra.mxu0 0
      %1751 = vmatpush.bf16.msra.mxu0 0
      %1752 = vmatpush.bf16.msra.mxu0 0
      %1753 = vmatpush.bf16.msra.mxu0 0
      %1754 = vmatpush.bf16.msra.mxu0 0
      %1755 = vmatpush.bf16.msra.mxu0 0
      %1756 = vmatpush.bf16.msra.mxu0 %v431
      %1757 = vmatmul.bf16.gmra.mxu0 %v1726
      %v1758 = vpop.f32.mrf.mxu0
      %v1759 = vadd.f32 0.0, %v1758
      %v1760 = vpop.f32.mrf.mxu0
      %v1761 = vadd.f32 0.0, %v1760
      %1762 = vmatmul.bf16.gmra.mxu0 %v1729
      %v1763 = vpop.f32.mrf.mxu0
      %v1764 = vadd.f32 0.0, %v1763
      %v1765 = vpop.f32.mrf.mxu0
      %v1766 = vadd.f32 0.0, %v1765
      %1767 = vmatmul.bf16.gmra.mxu0 %v1732
      %v1768 = vpop.f32.mrf.mxu0
      %v1769 = vadd.f32 0.0, %v1768
      %v1770 = vpop.f32.mrf.mxu0
      %v1771 = vadd.f32 0.0, %v1770
      %1772 = vmatmul.bf16.gmra.mxu0 %v1735
      %v1773 = vpop.f32.mrf.mxu0
      %v1774 = vadd.f32 0.0, %v1773
      %v1775 = vpop.f32.mrf.mxu0
      %v1776 = vadd.f32 0.0, %v1775
      %1777 = vmatmul.bf16.gmra.mxu0 %v1738
      %v1778 = vpop.f32.mrf.mxu0
      %v1779 = vadd.f32 0.0, %v1778
      %v1780 = vpop.f32.mrf.mxu0
      %v1781 = vadd.f32 0.0, %v1780
      %1782 = vmatmul.bf16.gmra.mxu0 %v1741
      %v1783 = vpop.f32.mrf.mxu0
      %v1784 = vadd.f32 0.0, %v1783
      %v1785 = vpop.f32.mrf.mxu0
      %v1786 = vadd.f32 0.0, %v1785
      %1787 = vmatmul.bf16.gmra.mxu0 %v1744
      %v1788 = vpop.f32.mrf.mxu0
      %v1789 = vadd.f32 0.0, %v1788
      %v1790 = vpop.f32.mrf.mxu0
      %v1791 = vadd.f32 0.0, %v1790
      %1792 = vmatmul.bf16.gmra.mxu0 %v1747
      %v1793 = vpop.f32.mrf.mxu0
      %v1794 = vadd.f32 0.0, %v1793
      %v1795 = vpop.f32.mrf.mxu0
      %v1796 = vadd.f32 0.0, %v1795
      %1797 = vdwg.mxu0
      %v1798 = vadd.f32 %v1686, %v1759
      %v1799 = vadd.f32 %v1688, %v1761
      %v1800 = vadd.f32 %v1691, %v1764
      %v1801 = vadd.f32 %v1693, %v1766
      %v1802 = vadd.f32 %v1696, %v1769
      %v1803 = vadd.f32 %v1698, %v1771
      %v1804 = vadd.f32 %v1701, %v1774
      %v1805 = vadd.f32 %v1703, %v1776
      %v1806 = vadd.f32 %v1706, %v1779
      %v1807 = vadd.f32 %v1708, %v1781
      %v1808 = vadd.f32 %v1711, %v1784
      %v1809 = vadd.f32 %v1713, %v1786
      %v1810 = vadd.f32 %v1716, %v1789
      %v1811 = vadd.f32 %v1718, %v1791
      %v1812 = vadd.f32 %v1721, %v1794
      %v1813 = vadd.f32 %v1723, %v1796
      %v1814 = vmul.f32 %v1798, %v232
      %v1815 = vmul.f32 %v1799, %v233
      %v1816 = vmul.f32 %v1800, %v232
      %v1817 = vmul.f32 %v1801, %v233
      %v1818 = vmul.f32 %v1802, %v232
      %v1819 = vmul.f32 %v1803, %v233
      %v1820 = vmul.f32 %v1804, %v232
      %v1821 = vmul.f32 %v1805, %v233
      %v1822 = vmul.f32 %v1806, %v232
      %v1823 = vmul.f32 %v1807, %v233
      %v1824 = vmul.f32 %v1808, %v232
      %v1825 = vmul.f32 %v1809, %v233
      %v1826 = vmul.f32 %v1810, %v232
      %v1827 = vmul.f32 %v1811, %v233
      %v1828 = vmul.f32 %v1812, %v232
      %v1829 = vmul.f32 %v1813, %v233
      %v1830 = vadd.f32 %v1814, %v1815
      %v1831 = vrot.slane %v1830, 4
      %v1832 = vadd.f32 %v1830, %v1831
      %v1833 = vrot.slane %v1832, 2
      %v1834 = vadd.f32 %v1832, %v1833
      %v1835 = vrot.slane %v1834, 1
      %v1836 = vadd.f32 %v1834, %v1835
      %v1837 = vadd.f32 %v1816, %v1817
      %v1838 = vrot.slane %v1837, 4
      %v1839 = vadd.f32 %v1837, %v1838
      %v1840 = vrot.slane %v1839, 2
      %v1841 = vadd.f32 %v1839, %v1840
      %v1842 = vrot.slane %v1841, 1
      %v1843 = vadd.f32 %v1841, %v1842
      %v1844 = vadd.f32 %v1818, %v1819
      %v1845 = vrot.slane %v1844, 4
      %v1846 = vadd.f32 %v1844, %v1845
      %v1847 = vrot.slane %v1846, 2
      %v1848 = vadd.f32 %v1846, %v1847
      %v1849 = vrot.slane %v1848, 1
      %v1850 = vadd.f32 %v1848, %v1849
      %v1851 = vadd.f32 %v1820, %v1821
      %v1852 = vrot.slane %v1851, 4
      %v1853 = vadd.f32 %v1851, %v1852
      %v1854 = vrot.slane %v1853, 2
      %v1855 = vadd.f32 %v1853, %v1854
      %v1856 = vrot.slane %v1855, 1
      %v1857 = vadd.f32 %v1855, %v1856
      %v1858 = vadd.f32 %v1822, %v1823
      %v1859 = vrot.slane %v1858, 4
      %v1860 = vadd.f32 %v1858, %v1859
      %v1861 = vrot.slane %v1860, 2
      %v1862 = vadd.f32 %v1860, %v1861
      %v1863 = vrot.slane %v1862, 1
      %v1864 = vadd.f32 %v1862, %v1863
      %v1865 = vadd.f32 %v1824, %v1825
      %v1866 = vrot.slane %v1865, 4
      %v1867 = vadd.f32 %v1865, %v1866
      %v1868 = vrot.slane %v1867, 2
      %v1869 = vadd.f32 %v1867, %v1868
      %v1870 = vrot.slane %v1869, 1
      %v1871 = vadd.f32 %v1869, %v1870
      %v1872 = vadd.f32 %v1826, %v1827
      %v1873 = vrot.slane %v1872, 4
      %v1874 = vadd.f32 %v1872, %v1873
      %v1875 = vrot.slane %v1874, 2
      %v1876 = vadd.f32 %v1874, %v1875
      %v1877 = vrot.slane %v1876, 1
      %v1878 = vadd.f32 %v1876, %v1877
      %v1879 = vadd.f32 %v1828, %v1829
      %v1880 = vrot.slane %v1879, 4
      %v1881 = vadd.f32 %v1879, %v1880
      %v1882 = vrot.slane %v1881, 2
      %v1883 = vadd.f32 %v1881, %v1882
      %v1884 = vrot.slane %v1883, 1
      %v1885 = vadd.f32 %v1883, %v1884
      %v1894 = vsel %vm651, %v1843, %v1836
      %v1895 = vsel %vm653, %v1850, %v1894
      %v1896 = vsel %vm655, %v1857, %v1895
      %v1897 = vsel %vm657, %v1864, %v1896
      %v1898 = vsel %vm659, %v1871, %v1897
      %v1899 = vsel %vm661, %v1878, %v1898
      %v1900 = vsel %vm663, %v1885, %v1899
      %1902 = vst [vmem:[%s191 + $0x18] sm:$0xff] %v1900
      %p1903 = scmp.lt.s32.totalorder %s17, 5
      %s1904 = scalar_select %p1903, %s17, 5
      %p1905 = scmp.lt.s32.totalorder %s18, 0
      %s1906 = scalar_select %p1905, %s18, 0
      %s1907 = smul.addr %s1904, 4
      %s1908 = sadd.s32 %s1906, %s1907
      %s1909 = smul.addr %s1908, 8
      %s1910 = scalar_lea.vmem %s2, %s1909
      // Predicated region
      $region29: #{_triplane_sample.1} parent=27 // pred_check
        %p1911 = pneg %p99
      $region30: #{_triplane_sample.1} parent=27 // pred_check_branch
        %1913 = sbr.rel (%p1911) target = $region32
      $region31: #{_triplane_sample.1} parent=27 // pred_region
        _
      $region32: #{_triplane_sample.1} parent=27 // pred_fallthru
        _
    $region28: #{_triplane_sample.1} parent=5 // pred_fallthru
      _
    %p1914 = scmp.le.s32.totalorder 2, %s8
    // Predicated region
    $region33: #{_triplane_sample.1} parent=5 // pred_check
      %p1915 = pneg %p1914
    $region34: #{_triplane_sample.1} parent=5 // pred_check_branch
      %1917 = sbr.rel (%p1915) target = $region36
    $region35: #{_triplane_sample.1} parent=5 // pred_region
      %s1918 = ssub.s32 %s8, 2
      // Predicated region
      $region37: #{_triplane_sample.1} parent=35 // pred_check
        %p1919 = pneg %p105
      $region38: #{_triplane_sample.1} parent=35 // pred_check_branch
        %1921 = sbr.rel (%p1919) target = $region40
      $region39: #{_triplane_sample.1} parent=35 // pred_region
        %p1922 = scmp.lt.s32.totalorder %s19, 5
        %s1923 = scalar_select %p1922, %s19, 5
        %p1924 = scmp.lt.s32.totalorder %s20, 0
        %s1925 = scalar_select %p1924, %s20, 0
        %s1926 = smul.addr %s1923, 4
        %s1927 = sadd.s32 %s1925, %s1926
        %s1928 = smul.addr %s1927, 8
        %s1929 = scalar_lea.vmem %s2, %s1928
      $region40: #{_triplane_sample.1} parent=35 // pred_fallthru
        _
    $region36: #{_triplane_sample.1} parent=5 // pred_fallthru
      _
  $region6: #{_triplane_sample.1} parent=0 // loop_footer
    %s12 = sadd.s32 1, %s8
  $region7: #{_triplane_sample.1} parent=0 // loop_footer_branch
    %7 = sbr.rel target = $region3
  $region8: #{_triplane_sample.1} parent=0 // loop_exit
    _

</llo_original>
